<compile_context>
chip_gen: v7x
topology: tpu7x:2x2x1
jax: 0.10.0
libtpu: 0.0.40
codegen_flags: <defaults>
</compile_context>

<pallas_src>
import functools

import jax
import jax.numpy as jnp
from jax.experimental import pallas as pl
from jax.experimental.pallas import tpu as pltpu


# --------------------------- fused Pallas kernel ----------------------------

def fused_encoder_kernel(*refs, B, L, K, conv_dims, ln_eps):
    """Whole forward pass; everything resident in VMEM.

    refs layout (order as passed by pallas_call):
      inputs : x2 (B*L, Din), mask2 (B*L, 1), pool (B, B*L),
               emb_w (Din, E), emb_b (1, E),
               [w_i (K*Cin_i, Cout_i), b_i (1, Cout_i)] per conv layer,
               head_w (C_last, O), head_b (1, O), ln_g (1, O), ln_b (1, O)
      outputs: out (B, O)
      scratch: col_i (B*L, K*Cin_i) per conv layer   (im2col buffers)
    """
    n_layers = len(conv_dims)
    x_ref, m_ref, pool_ref, ew_ref, eb_ref = refs[:5]
    conv_refs = refs[5:5 + 2 * n_layers]
    base = 5 + 2 * n_layers
    hw_ref, hb_ref, g_ref, lnb_ref = refs[base:base + 4]
    o_ref = refs[base + 4]
    col_refs = refs[base + 5:]

    pad = K // 2
    M = B * L

    # --- Linear embedding (+ bias) and padding mask (VPU, Din is tiny) ------
    x = x_ref[...]                                   # (M, Din)
    ew = ew_ref[...]                                 # (Din, E)
    E = ew.shape[1]
    acc = jnp.zeros((M, E), jnp.float32)
    for d in range(x.shape[1]):
        acc = acc + x[:, d:d + 1] * ew[d:d + 1, :]
    act = (acc + eb_ref[...]) * m_ref[...]           # (M, E)

    # --- conv blocks: Conv1d('same') + folded BatchNorm + SiLU --------------
    for i, (cin, cout) in enumerate(conv_dims):
        w_ref = conv_refs[2 * i]                     # (K*cin, cout), BN folded
        b_ref = conv_refs[2 * i + 1]                 # (1, cout),      BN folded
        col_ref = col_refs[i]                        # (M, K*cin) scratch
        col_ref[...] = jnp.zeros_like(col_ref)       # zero halo taps ('same' pad)
        for t in range(K):
            off = t - pad                            # input offset for tap t
            lo = max(0, -off)
            hi = min(L, L - off)
            if hi <= lo:
                continue
            for b in range(B):                       # per-sample halo handling
                col_ref[b * L + lo:b * L + hi, t * cin:(t + 1) * cin] = (
                    act[b * L + lo + off:b * L + hi + off, :])
        # single MXU matmul, contraction depth K*cin
        y = jnp.dot(col_ref[...], w_ref[...],
                    preferred_element_type=jnp.float32) + b_ref[...]
        act = y * jax.nn.sigmoid(y)                  # SiLU; Dropout = id (eval)

    # --- head: mean-pool -> Linear -> SiLU -> LayerNorm ---------------------
    pooled = jnp.dot(pool_ref[...], act,
                     preferred_element_type=jnp.float32)          # (B, C_last)
    h = jnp.dot(pooled, hw_ref[...],
                preferred_element_type=jnp.float32) + hb_ref[...]  # (B, O)
    h = h * jax.nn.sigmoid(h)                        # SiLU; Dropout = id (eval)
    mu = jnp.mean(h, axis=-1, keepdims=True)
    var = jnp.mean(jnp.square(h - mu), axis=-1, keepdims=True)
    o_ref[...] = ((h - mu) * jax.lax.rsqrt(var + ln_eps) * g_ref[...]
                  + lnb_ref[...]).astype(o_ref.dtype)


# ------------------------------- wrapper -------------------------------------

def genomic_encoder_forward(params, x, mask=None, *, bn_eps=1e-5, ln_eps=1e-5):
    B, L, Din = x.shape
    if mask is None:
        mask = jnp.ones((B, L), jnp.float32)
    M = B * L
    E = params["emb_w"].shape[1]
    conv = params["conv"]
    K = conv[0]["w"].shape[0]
    # 'same' length only matches PyTorch Conv1d(pad=K//2) for odd K.
    assert K % 2 == 1, "kernel_size must be odd to keep output length == L"
    C_last, O = params["head_w"].shape

    # Fold eval-mode BatchNorm1d into conv weights/bias; flatten to im2col 2-D.
    folded, conv_dims = [], []
    prev = E
    for cp in conv:
        Kk, cin, cout = cp["w"].shape
        assert Kk == K and cin == prev
        scale = cp["gamma"] / jnp.sqrt(cp["rvar"] + bn_eps)            # (cout,)
        w2d = (cp["w"] * scale).reshape(K * cin, cout)
        b2d = (cp["b"] * scale + cp["beta"] - cp["rmean"] * scale).reshape(1, cout)
        folded.append((w2d, b2d))
        conv_dims.append((cin, cout))
        prev = cout
    assert prev == C_last

    x2 = x.reshape(M, Din).astype(jnp.float32)
    m2 = mask.reshape(M, 1).astype(jnp.float32)
    # Per-sample mean pooling as a constant matmul (handles batch boundaries
    # without any in-kernel reshape / concatenate).
    pool = jnp.kron(jnp.eye(B, dtype=jnp.float32),
                    jnp.ones((1, L), jnp.float32)) / float(L)          # (B, M)

    args = [x2, m2, pool, params["emb_w"], params["emb_b"].reshape(1, E)]
    for w2d, b2d in folded:
        args += [w2d, b2d]
    args += [params["head_w"], params["head_b"].reshape(1, O),
             params["ln_g"].reshape(1, O), params["ln_b"].reshape(1, O)]

    # advisory cost estimate for the XLA scheduler
    flops = 2 * M * Din * E
    for cin, cout in conv_dims:
        flops += 2 * M * (K * cin) * cout
    flops += 2 * B * M * C_last + 2 * B * C_last * O
    transcendentals = M * sum(c for _, c in conv_dims) + B * O
    bytes_accessed = 4 * (sum(int(a.size) for a in args) + B * O)

    kernel = functools.partial(
        fused_encoder_kernel, B=B, L=L, K=K,
        conv_dims=tuple(conv_dims), ln_eps=ln_eps)

    return pl.pallas_call(
        kernel,
        out_shape=jax.ShapeDtypeStruct((B, O), jnp.float32),
        scratch_shapes=[pltpu.VMEM((M, K * cin), jnp.float32)
                        for cin, _ in conv_dims],
        compiler_params=pltpu.CompilerParams(vmem_limit_bytes=32 * 1024 * 1024),
        cost_estimate=pl.CostEstimate(flops=flops,
                                      transcendentals=transcendentals,
                                      bytes_accessed=bytes_accessed),
    )(*args)


# ------------------------- parameter construction ---------------------------

def init_params(key, input_dim, embed_dim, hidden_dim, output_dim,
                num_layers, kernel_size):
    params = {}
    k_emb, k_conv, k_head = jax.random.split(key, 3)

    # embedding: Linear(input_dim, embed_dim)  (weights stored as (in, out))
    params["emb_w"] = 0.1 * jax.random.normal(k_emb, (input_dim, embed_dim),
                                              jnp.float32)
    params["emb_b"] = jnp.zeros((embed_dim,), jnp.float32)

    # conv blocks (weights stored as (K, Cin, Cout); torch layout would be
    # (Cout, Cin, K) -> transpose when porting a checkpoint)
    conv_params = []
    current = embed_dim
    ck = jax.random.split(k_conv, num_layers)
    for i in range(num_layers):
        out_dim = hidden_dim if i > 0 else hidden_dim // 2
        w = 0.05 * jax.random.normal(ck[i], (kernel_size, current, out_dim),
                                     jnp.float32)
        conv_params.append(dict(
            w=w,
            b=jnp.zeros((out_dim,), jnp.float32),
            gamma=jnp.ones((out_dim,), jnp.float32),
            beta=jnp.zeros((out_dim,), jnp.float32),
            rmean=jnp.zeros((out_dim,), jnp.float32),
            rvar=jnp.ones((out_dim,), jnp.float32),
        ))
        current = out_dim
    params["conv"] = conv_params

    # aggregation Linear(hidden_dim, output_dim) + LayerNorm(output_dim)
    params["head_w"] = 0.05 * jax.random.normal(k_head, (hidden_dim, output_dim),
                                                jnp.float32)
    params["head_b"] = jnp.zeros((output_dim,), jnp.float32)
    params["ln_g"] = jnp.ones((output_dim,), jnp.float32)
    params["ln_b"] = jnp.zeros((output_dim,), jnp.float32)
    return params


# ----------------------- pure-JAX reference (checking) ----------------------

def reference_forward(params, x, mask, bn_eps=1e-5, ln_eps=1e-5):
    B, L, _ = x.shape
    emb = x @ params["emb_w"] + params["emb_b"]
    act = emb * mask[..., None]
    for cp in params["conv"]:
        K, cin, cout = cp["w"].shape
        pad = K // 2
        xp = jnp.pad(act, ((0, 0), (pad, pad), (0, 0)))
        y = jnp.zeros((B, L, cout), jnp.float32)
        for t in range(K):
            y = y + jnp.einsum('blc,co->blo', xp[:, t:t + L, :], cp["w"][t])
        y = y + cp["b"]
        scale = cp["gamma"] / jnp.sqrt(cp["rvar"] + bn_eps)
        y = y * scale + (cp["beta"] - cp["rmean"] * scale)
        act = y * jax.nn.sigmoid(y)
    pooled = jnp.mean(act, axis=1)
    h = pooled @ params["head_w"] + params["head_b"]
    h = h * jax.nn.sigmoid(h)
    mu = jnp.mean(h, axis=-1, keepdims=True)
    var = jnp.mean(jnp.square(h - mu), axis=-1, keepdims=True)
    return (h - mu) * jax.lax.rsqrt(var + ln_eps) * params["ln_g"] + params["ln_b"]


# --------------------------------- main --------------------------------------

if __name__ == "__main__":
    # Small shapes consistent with the module's forward semantics.
    B, L = 2, 16
    INPUT_DIM, EMBED_DIM, HIDDEN_DIM, OUTPUT_DIM = 4, 32, 64, 128
    NUM_LAYERS, KERNEL_SIZE = 4, 7

    key = jax.random.PRNGKey(0)
    k_p, k_x = jax.random.split(key)
    params = init_params(k_p, INPUT_DIM, EMBED_DIM, HIDDEN_DIM, OUTPUT_DIM,
                         NUM_LAYERS, KERNEL_SIZE)

    # one-hot DNA input [B, L, 4]
    idx = jax.random.randint(k_x, (B, L), 0, INPUT_DIM)
    x = jax.nn.one_hot(idx, INPUT_DIM, dtype=jnp.float32)
    mask = jnp.ones((B, L), jnp.float32)

    out = genomic_encoder_forward(params, x, mask)
    jax.block_until_ready(out)
    assert out.shape == (B, OUTPUT_DIM), out.shape

    ref = reference_forward(params, x, mask)
    err = float(jnp.max(jnp.abs(out - ref)))
    assert err < 1e-4, f"max abs err vs reference: {err}"

    print("KERNEL_OK")
</pallas_src>

<mosaic_0001>
module attributes {stable_mosaic.version = 11 : i64} {
  func.func @fused_encoder_kernel(%arg0: memref<32x4xf32, #tpu.memory_space<vmem>>, %arg1: memref<32x1xf32, #tpu.memory_space<vmem>>, %arg2: memref<2x32xf32, #tpu.memory_space<vmem>>, %arg3: memref<4x32xf32, #tpu.memory_space<vmem>>, %arg4: memref<1x32xf32, #tpu.memory_space<vmem>>, %arg5: memref<224x32xf32, #tpu.memory_space<vmem>>, %arg6: memref<1x32xf32, #tpu.memory_space<vmem>>, %arg7: memref<224x64xf32, #tpu.memory_space<vmem>>, %arg8: memref<1x64xf32, #tpu.memory_space<vmem>>, %arg9: memref<448x64xf32, #tpu.memory_space<vmem>>, %arg10: memref<1x64xf32, #tpu.memory_space<vmem>>, %arg11: memref<448x64xf32, #tpu.memory_space<vmem>>, %arg12: memref<1x64xf32, #tpu.memory_space<vmem>>, %arg13: memref<64x128xf32, #tpu.memory_space<vmem>>, %arg14: memref<1x128xf32, #tpu.memory_space<vmem>>, %arg15: memref<1x128xf32, #tpu.memory_space<vmem>>, %arg16: memref<1x128xf32, #tpu.memory_space<vmem>>, %arg17: memref<2x128xf32, #tpu.memory_space<vmem>>, %arg18: memref<32x224xf32, #tpu.memory_space<vmem>>, %arg19: memref<32x224xf32, #tpu.memory_space<vmem>>, %arg20: memref<32x448xf32, #tpu.memory_space<vmem>>, %arg21: memref<32x448xf32, #tpu.memory_space<vmem>>) attributes {dimension_semantics = [], scalar_prefetch = 0 : i64, scratch_operands = 4 : i64, tpu.core_type = #tpu.core_type<tc>} {
    %c0 = arith.constant 0 : index
    %c0_0 = arith.constant 0 : index
    %0 = vector.load %arg0[%c0, %c0_0] : memref<32x4xf32, #tpu.memory_space<vmem>>, vector<32x4xf32>
    %c0_1 = arith.constant 0 : index
    %c0_2 = arith.constant 0 : index
    %1 = vector.load %arg3[%c0_1, %c0_2] : memref<4x32xf32, #tpu.memory_space<vmem>>, vector<4x32xf32>
    %cst = arith.constant 0.000000e+00 : f32
    %2 = vector.broadcast %cst : f32 to vector<32x32xf32>
    %3 = vector.extract_strided_slice %0 {offsets = [0, 0], sizes = [32, 1], strides = [1, 1]} : vector<32x4xf32> to vector<32x1xf32>
    %4 = vector.extract_strided_slice %1 {offsets = [0, 0], sizes = [1, 32], strides = [1, 1]} : vector<4x32xf32> to vector<1x32xf32>
    %5 = vector.broadcast %3 : vector<32x1xf32> to vector<32x32xf32>
    %6 = vector.broadcast %4 : vector<1x32xf32> to vector<32x32xf32>
    %7 = arith.mulf %5, %6 : vector<32x32xf32>
    %8 = arith.addf %2, %7 : vector<32x32xf32>
    %9 = vector.extract_strided_slice %0 {offsets = [0, 1], sizes = [32, 1], strides = [1, 1]} : vector<32x4xf32> to vector<32x1xf32>
    %10 = vector.extract_strided_slice %1 {offsets = [1, 0], sizes = [1, 32], strides = [1, 1]} : vector<4x32xf32> to vector<1x32xf32>
    %11 = vector.broadcast %9 : vector<32x1xf32> to vector<32x32xf32>
    %12 = vector.broadcast %10 : vector<1x32xf32> to vector<32x32xf32>
    %13 = arith.mulf %11, %12 : vector<32x32xf32>
    %14 = arith.addf %8, %13 : vector<32x32xf32>
    %15 = vector.extract_strided_slice %0 {offsets = [0, 2], sizes = [32, 1], strides = [1, 1]} : vector<32x4xf32> to vector<32x1xf32>
    %16 = vector.extract_strided_slice %1 {offsets = [2, 0], sizes = [1, 32], strides = [1, 1]} : vector<4x32xf32> to vector<1x32xf32>
    %17 = vector.broadcast %15 : vector<32x1xf32> to vector<32x32xf32>
    %18 = vector.broadcast %16 : vector<1x32xf32> to vector<32x32xf32>
    %19 = arith.mulf %17, %18 : vector<32x32xf32>
    %20 = arith.addf %14, %19 : vector<32x32xf32>
    %21 = vector.extract_strided_slice %0 {offsets = [0, 3], sizes = [32, 1], strides = [1, 1]} : vector<32x4xf32> to vector<32x1xf32>
    %22 = vector.extract_strided_slice %1 {offsets = [3, 0], sizes = [1, 32], strides = [1, 1]} : vector<4x32xf32> to vector<1x32xf32>
    %23 = vector.broadcast %21 : vector<32x1xf32> to vector<32x32xf32>
    %24 = vector.broadcast %22 : vector<1x32xf32> to vector<32x32xf32>
    %25 = arith.mulf %23, %24 : vector<32x32xf32>
    %26 = arith.addf %20, %25 : vector<32x32xf32>
    %c0_3 = arith.constant 0 : index
    %c0_4 = arith.constant 0 : index
    %27 = vector.load %arg4[%c0_3, %c0_4] : memref<1x32xf32, #tpu.memory_space<vmem>>, vector<1x32xf32>
    %28 = vector.broadcast %27 : vector<1x32xf32> to vector<32x32xf32>
    %29 = arith.addf %26, %28 : vector<32x32xf32>
    %c0_5 = arith.constant 0 : index
    %c0_6 = arith.constant 0 : index
    %30 = vector.load %arg1[%c0_5, %c0_6] : memref<32x1xf32, #tpu.memory_space<vmem>>, vector<32x1xf32>
    %31 = vector.broadcast %30 : vector<32x1xf32> to vector<32x32xf32>
    %32 = arith.mulf %29, %31 : vector<32x32xf32>
    %cst_7 = arith.constant 0.000000e+00 : f32
    %33 = vector.broadcast %cst_7 : f32 to vector<32x224xf32>
    %c0_8 = arith.constant 0 : index
    %c0_9 = arith.constant 0 : index
    %34 = vector.load %arg18[%c0_8, %c0_9] : memref<32x224xf32, #tpu.memory_space<vmem>>, vector<32x224xf32>
    tpu.vector_store %arg18[%c0_8, %c0_9], %33 {strides = array<i32>} : memref<32x224xf32, #tpu.memory_space<vmem>>, vector<32x224xf32>,
    %35 = vector.extract_strided_slice %32 {offsets = [0, 0], sizes = [13, 32], strides = [1, 1]} : vector<32x32xf32> to vector<13x32xf32>
    %c3 = arith.constant 3 : index
    %c0_10 = arith.constant 0 : index
    %36 = vector.load %arg18[%c3, %c0_10] : memref<32x224xf32, #tpu.memory_space<vmem>>, vector<13x32xf32>
    tpu.vector_store %arg18[%c3, %c0_10], %35 {strides = array<i32>} : memref<32x224xf32, #tpu.memory_space<vmem>>, vector<13x32xf32>,
    %37 = vector.extract_strided_slice %32 {offsets = [16, 0], sizes = [13, 32], strides = [1, 1]} : vector<32x32xf32> to vector<13x32xf32>
    %c19 = arith.constant 19 : index
    %c0_11 = arith.constant 0 : index
    %38 = vector.load %arg18[%c19, %c0_11] : memref<32x224xf32, #tpu.memory_space<vmem>>, vector<13x32xf32>
    tpu.vector_store %arg18[%c19, %c0_11], %37 {strides = array<i32>} : memref<32x224xf32, #tpu.memory_space<vmem>>, vector<13x32xf32>,
    %39 = vector.extract_strided_slice %32 {offsets = [0, 0], sizes = [14, 32], strides = [1, 1]} : vector<32x32xf32> to vector<14x32xf32>
    %c2 = arith.constant 2 : index
    %c32 = arith.constant 32 : index
    %40 = vector.load %arg18[%c2, %c32] : memref<32x224xf32, #tpu.memory_space<vmem>>, vector<14x32xf32>
    tpu.vector_store %arg18[%c2, %c32], %39 {strides = array<i32>} : memref<32x224xf32, #tpu.memory_space<vmem>>, vector<14x32xf32>,
    %41 = vector.extract_strided_slice %32 {offsets = [16, 0], sizes = [14, 32], strides = [1, 1]} : vector<32x32xf32> to vector<14x32xf32>
    %c18 = arith.constant 18 : index
    %c32_12 = arith.constant 32 : index
    %42 = vector.load %arg18[%c18, %c32_12] : memref<32x224xf32, #tpu.memory_space<vmem>>, vector<14x32xf32>
    tpu.vector_store %arg18[%c18, %c32_12], %41 {strides = array<i32>} : memref<32x224xf32, #tpu.memory_space<vmem>>, vector<14x32xf32>,
    %43 = vector.extract_strided_slice %32 {offsets = [0, 0], sizes = [15, 32], strides = [1, 1]} : vector<32x32xf32> to vector<15x32xf32>
    %c1 = arith.constant 1 : index
    %c64 = arith.constant 64 : index
    %44 = vector.load %arg18[%c1, %c64] : memref<32x224xf32, #tpu.memory_space<vmem>>, vector<15x32xf32>
    tpu.vector_store %arg18[%c1, %c64], %43 {strides = array<i32>} : memref<32x224xf32, #tpu.memory_space<vmem>>, vector<15x32xf32>,
    %45 = vector.extract_strided_slice %32 {offsets = [16, 0], sizes = [15, 32], strides = [1, 1]} : vector<32x32xf32> to vector<15x32xf32>
    %c17 = arith.constant 17 : index
    %c64_13 = arith.constant 64 : index
    %46 = vector.load %arg18[%c17, %c64_13] : memref<32x224xf32, #tpu.memory_space<vmem>>, vector<15x32xf32>
    tpu.vector_store %arg18[%c17, %c64_13], %45 {strides = array<i32>} : memref<32x224xf32, #tpu.memory_space<vmem>>, vector<15x32xf32>,
    %47 = vector.extract_strided_slice %32 {offsets = [0, 0], sizes = [16, 32], strides = [1, 1]} : vector<32x32xf32> to vector<16x32xf32>
    %c0_14 = arith.constant 0 : index
    %c96 = arith.constant 96 : index
    %48 = vector.load %arg18[%c0_14, %c96] : memref<32x224xf32, #tpu.memory_space<vmem>>, vector<16x32xf32>
    tpu.vector_store %arg18[%c0_14, %c96], %47 {strides = array<i32>} : memref<32x224xf32, #tpu.memory_space<vmem>>, vector<16x32xf32>,
    %49 = vector.extract_strided_slice %32 {offsets = [16, 0], sizes = [16, 32], strides = [1, 1]} : vector<32x32xf32> to vector<16x32xf32>
    %c16 = arith.constant 16 : index
    %c96_15 = arith.constant 96 : index
    %50 = vector.load %arg18[%c16, %c96_15] : memref<32x224xf32, #tpu.memory_space<vmem>>, vector<16x32xf32>
    tpu.vector_store %arg18[%c16, %c96_15], %49 {strides = array<i32>} : memref<32x224xf32, #tpu.memory_space<vmem>>, vector<16x32xf32>,
    %51 = vector.extract_strided_slice %32 {offsets = [1, 0], sizes = [15, 32], strides = [1, 1]} : vector<32x32xf32> to vector<15x32xf32>
    %c0_16 = arith.constant 0 : index
    %c128 = arith.constant 128 : index
    %52 = vector.load %arg18[%c0_16, %c128] : memref<32x224xf32, #tpu.memory_space<vmem>>, vector<15x32xf32>
    tpu.vector_store %arg18[%c0_16, %c128], %51 {strides = array<i32>} : memref<32x224xf32, #tpu.memory_space<vmem>>, vector<15x32xf32>,
    %53 = vector.extract_strided_slice %32 {offsets = [17, 0], sizes = [15, 32], strides = [1, 1]} : vector<32x32xf32> to vector<15x32xf32>
    %c16_17 = arith.constant 16 : index
    %c128_18 = arith.constant 128 : index
    %54 = vector.load %arg18[%c16_17, %c128_18] : memref<32x224xf32, #tpu.memory_space<vmem>>, vector<15x32xf32>
    tpu.vector_store %arg18[%c16_17, %c128_18], %53 {strides = array<i32>} : memref<32x224xf32, #tpu.memory_space<vmem>>, vector<15x32xf32>,
    %55 = vector.extract_strided_slice %32 {offsets = [2, 0], sizes = [14, 32], strides = [1, 1]} : vector<32x32xf32> to vector<14x32xf32>
    %c0_19 = arith.constant 0 : index
    %c160 = arith.constant 160 : index
    %56 = vector.load %arg18[%c0_19, %c160] : memref<32x224xf32, #tpu.memory_space<vmem>>, vector<14x32xf32>
    tpu.vector_store %arg18[%c0_19, %c160], %55 {strides = array<i32>} : memref<32x224xf32, #tpu.memory_space<vmem>>, vector<14x32xf32>,
    %57 = vector.extract_strided_slice %32 {offsets = [18, 0], sizes = [14, 32], strides = [1, 1]} : vector<32x32xf32> to vector<14x32xf32>
    %c16_20 = arith.constant 16 : index
    %c160_21 = arith.constant 160 : index
    %58 = vector.load %arg18[%c16_20, %c160_21] : memref<32x224xf32, #tpu.memory_space<vmem>>, vector<14x32xf32>
    tpu.vector_store %arg18[%c16_20, %c160_21], %57 {strides = array<i32>} : memref<32x224xf32, #tpu.memory_space<vmem>>, vector<14x32xf32>,
    %59 = vector.extract_strided_slice %32 {offsets = [3, 0], sizes = [13, 32], strides = [1, 1]} : vector<32x32xf32> to vector<13x32xf32>
    %c0_22 = arith.constant 0 : index
    %c192 = arith.constant 192 : index
    %60 = vector.load %arg18[%c0_22, %c192] : memref<32x224xf32, #tpu.memory_space<vmem>>, vector<13x32xf32>
    tpu.vector_store %arg18[%c0_22, %c192], %59 {strides = array<i32>} : memref<32x224xf32, #tpu.memory_space<vmem>>, vector<13x32xf32>,
    %61 = vector.extract_strided_slice %32 {offsets = [19, 0], sizes = [13, 32], strides = [1, 1]} : vector<32x32xf32> to vector<13x32xf32>
    %c16_23 = arith.constant 16 : index
    %c192_24 = arith.constant 192 : index
    %62 = vector.load %arg18[%c16_23, %c192_24] : memref<32x224xf32, #tpu.memory_space<vmem>>, vector<13x32xf32>
    tpu.vector_store %arg18[%c16_23, %c192_24], %61 {strides = array<i32>} : memref<32x224xf32, #tpu.memory_space<vmem>>, vector<13x32xf32>,
    %c0_25 = arith.constant 0 : index
    %c0_26 = arith.constant 0 : index
    %63 = vector.load %arg18[%c0_25, %c0_26] : memref<32x224xf32, #tpu.memory_space<vmem>>, vector<32x224xf32>
    %c0_27 = arith.constant 0 : index
    %c0_28 = arith.constant 0 : index
    %64 = vector.load %arg5[%c0_27, %c0_28] : memref<224x32xf32, #tpu.memory_space<vmem>>, vector<224x32xf32>
    %cst_29 = arith.constant dense<0.000000e+00> : vector<32x32xf32>
    %65 = tpu.matmul %63, %64, %cst_29 {dimension_numbers = #tpu.dot_dimension_numbers<[1], [0], [0], [1], [0, 0, 1, 1], [], []>} : vector<32x224xf32>, vector<224x32xf32>, vector<32x32xf32> -> vector<32x32xf32>
    %c0_30 = arith.constant 0 : index
    %c0_31 = arith.constant 0 : index
    %66 = vector.load %arg6[%c0_30, %c0_31] : memref<1x32xf32, #tpu.memory_space<vmem>>, vector<1x32xf32>
    %67 = vector.broadcast %66 : vector<1x32xf32> to vector<32x32xf32>
    %68 = arith.addf %65, %67 : vector<32x32xf32>
    %69 = arith.negf %68 : vector<32x32xf32>
    %70 = math.exp %69 : vector<32x32xf32>
    %cst_32 = arith.constant 1.000000e+00 : f32
    %71 = vector.broadcast %cst_32 : f32 to vector<32x32xf32>
    %72 = arith.addf %71, %70 : vector<32x32xf32>
    %73 = arith.divf %71, %72 : vector<32x32xf32>
    %74 = arith.mulf %68, %73 : vector<32x32xf32>
    %cst_33 = arith.constant 0.000000e+00 : f32
    %75 = vector.broadcast %cst_33 : f32 to vector<32x224xf32>
    %c0_34 = arith.constant 0 : index
    %c0_35 = arith.constant 0 : index
    %76 = vector.load %arg19[%c0_34, %c0_35] : memref<32x224xf32, #tpu.memory_space<vmem>>, vector<32x224xf32>
    tpu.vector_store %arg19[%c0_34, %c0_35], %75 {strides = array<i32>} : memref<32x224xf32, #tpu.memory_space<vmem>>, vector<32x224xf32>,
    %77 = vector.extract_strided_slice %74 {offsets = [0, 0], sizes = [13, 32], strides = [1, 1]} : vector<32x32xf32> to vector<13x32xf32>
    %c3_36 = arith.constant 3 : index
    %c0_37 = arith.constant 0 : index
    %78 = vector.load %arg19[%c3_36, %c0_37] : memref<32x224xf32, #tpu.memory_space<vmem>>, vector<13x32xf32>
    tpu.vector_store %arg19[%c3_36, %c0_37], %77 {strides = array<i32>} : memref<32x224xf32, #tpu.memory_space<vmem>>, vector<13x32xf32>,
    %79 = vector.extract_strided_slice %74 {offsets = [16, 0], sizes = [13, 32], strides = [1, 1]} : vector<32x32xf32> to vector<13x32xf32>
    %c19_38 = arith.constant 19 : index
    %c0_39 = arith.constant 0 : index
    %80 = vector.load %arg19[%c19_38, %c0_39] : memref<32x224xf32, #tpu.memory_space<vmem>>, vector<13x32xf32>
    tpu.vector_store %arg19[%c19_38, %c0_39], %79 {strides = array<i32>} : memref<32x224xf32, #tpu.memory_space<vmem>>, vector<13x32xf32>,
    %81 = vector.extract_strided_slice %74 {offsets = [0, 0], sizes = [14, 32], strides = [1, 1]} : vector<32x32xf32> to vector<14x32xf32>
    %c2_40 = arith.constant 2 : index
    %c32_41 = arith.constant 32 : index
    %82 = vector.load %arg19[%c2_40, %c32_41] : memref<32x224xf32, #tpu.memory_space<vmem>>, vector<14x32xf32>
    tpu.vector_store %arg19[%c2_40, %c32_41], %81 {strides = array<i32>} : memref<32x224xf32, #tpu.memory_space<vmem>>, vector<14x32xf32>,
    %83 = vector.extract_strided_slice %74 {offsets = [16, 0], sizes = [14, 32], strides = [1, 1]} : vector<32x32xf32> to vector<14x32xf32>
    %c18_42 = arith.constant 18 : index
    %c32_43 = arith.constant 32 : index
    %84 = vector.load %arg19[%c18_42, %c32_43] : memref<32x224xf32, #tpu.memory_space<vmem>>, vector<14x32xf32>
    tpu.vector_store %arg19[%c18_42, %c32_43], %83 {strides = array<i32>} : memref<32x224xf32, #tpu.memory_space<vmem>>, vector<14x32xf32>,
    %85 = vector.extract_strided_slice %74 {offsets = [0, 0], sizes = [15, 32], strides = [1, 1]} : vector<32x32xf32> to vector<15x32xf32>
    %c1_44 = arith.constant 1 : index
    %c64_45 = arith.constant 64 : index
    %86 = vector.load %arg19[%c1_44, %c64_45] : memref<32x224xf32, #tpu.memory_space<vmem>>, vector<15x32xf32>
    tpu.vector_store %arg19[%c1_44, %c64_45], %85 {strides = array<i32>} : memref<32x224xf32, #tpu.memory_space<vmem>>, vector<15x32xf32>,
    %87 = vector.extract_strided_slice %74 {offsets = [16, 0], sizes = [15, 32], strides = [1, 1]} : vector<32x32xf32> to vector<15x32xf32>
    %c17_46 = arith.constant 17 : index
    %c64_47 = arith.constant 64 : index
    %88 = vector.load %arg19[%c17_46, %c64_47] : memref<32x224xf32, #tpu.memory_space<vmem>>, vector<15x32xf32>
    tpu.vector_store %arg19[%c17_46, %c64_47], %87 {strides = array<i32>} : memref<32x224xf32, #tpu.memory_space<vmem>>, vector<15x32xf32>,
    %89 = vector.extract_strided_slice %74 {offsets = [0, 0], sizes = [16, 32], strides = [1, 1]} : vector<32x32xf32> to vector<16x32xf32>
    %c0_48 = arith.constant 0 : index
    %c96_49 = arith.constant 96 : index
    %90 = vector.load %arg19[%c0_48, %c96_49] : memref<32x224xf32, #tpu.memory_space<vmem>>, vector<16x32xf32>
    tpu.vector_store %arg19[%c0_48, %c96_49], %89 {strides = array<i32>} : memref<32x224xf32, #tpu.memory_space<vmem>>, vector<16x32xf32>,
    %91 = vector.extract_strided_slice %74 {offsets = [16, 0], sizes = [16, 32], strides = [1, 1]} : vector<32x32xf32> to vector<16x32xf32>
    %c16_50 = arith.constant 16 : index
    %c96_51 = arith.constant 96 : index
    %92 = vector.load %arg19[%c16_50, %c96_51] : memref<32x224xf32, #tpu.memory_space<vmem>>, vector<16x32xf32>
    tpu.vector_store %arg19[%c16_50, %c96_51], %91 {strides = array<i32>} : memref<32x224xf32, #tpu.memory_space<vmem>>, vector<16x32xf32>,
    %93 = vector.extract_strided_slice %74 {offsets = [1, 0], sizes = [15, 32], strides = [1, 1]} : vector<32x32xf32> to vector<15x32xf32>
    %c0_52 = arith.constant 0 : index
    %c128_53 = arith.constant 128 : index
    %94 = vector.load %arg19[%c0_52, %c128_53] : memref<32x224xf32, #tpu.memory_space<vmem>>, vector<15x32xf32>
    tpu.vector_store %arg19[%c0_52, %c128_53], %93 {strides = array<i32>} : memref<32x224xf32, #tpu.memory_space<vmem>>, vector<15x32xf32>,
    %95 = vector.extract_strided_slice %74 {offsets = [17, 0], sizes = [15, 32], strides = [1, 1]} : vector<32x32xf32> to vector<15x32xf32>
    %c16_54 = arith.constant 16 : index
    %c128_55 = arith.constant 128 : index
    %96 = vector.load %arg19[%c16_54, %c128_55] : memref<32x224xf32, #tpu.memory_space<vmem>>, vector<15x32xf32>
    tpu.vector_store %arg19[%c16_54, %c128_55], %95 {strides = array<i32>} : memref<32x224xf32, #tpu.memory_space<vmem>>, vector<15x32xf32>,
    %97 = vector.extract_strided_slice %74 {offsets = [2, 0], sizes = [14, 32], strides = [1, 1]} : vector<32x32xf32> to vector<14x32xf32>
    %c0_56 = arith.constant 0 : index
    %c160_57 = arith.constant 160 : index
    %98 = vector.load %arg19[%c0_56, %c160_57] : memref<32x224xf32, #tpu.memory_space<vmem>>, vector<14x32xf32>
    tpu.vector_store %arg19[%c0_56, %c160_57], %97 {strides = array<i32>} : memref<32x224xf32, #tpu.memory_space<vmem>>, vector<14x32xf32>,
    %99 = vector.extract_strided_slice %74 {offsets = [18, 0], sizes = [14, 32], strides = [1, 1]} : vector<32x32xf32> to vector<14x32xf32>
    %c16_58 = arith.constant 16 : index
    %c160_59 = arith.constant 160 : index
    %100 = vector.load %arg19[%c16_58, %c160_59] : memref<32x224xf32, #tpu.memory_space<vmem>>, vector<14x32xf32>
    tpu.vector_store %arg19[%c16_58, %c160_59], %99 {strides = array<i32>} : memref<32x224xf32, #tpu.memory_space<vmem>>, vector<14x32xf32>,
    %101 = vector.extract_strided_slice %74 {offsets = [3, 0], sizes = [13, 32], strides = [1, 1]} : vector<32x32xf32> to vector<13x32xf32>
    %c0_60 = arith.constant 0 : index
    %c192_61 = arith.constant 192 : index
    %102 = vector.load %arg19[%c0_60, %c192_61] : memref<32x224xf32, #tpu.memory_space<vmem>>, vector<13x32xf32>
    tpu.vector_store %arg19[%c0_60, %c192_61], %101 {strides = array<i32>} : memref<32x224xf32, #tpu.memory_space<vmem>>, vector<13x32xf32>,
    %103 = vector.extract_strided_slice %74 {offsets = [19, 0], sizes = [13, 32], strides = [1, 1]} : vector<32x32xf32> to vector<13x32xf32>
    %c16_62 = arith.constant 16 : index
    %c192_63 = arith.constant 192 : index
    %104 = vector.load %arg19[%c16_62, %c192_63] : memref<32x224xf32, #tpu.memory_space<vmem>>, vector<13x32xf32>
    tpu.vector_store %arg19[%c16_62, %c192_63], %103 {strides = array<i32>} : memref<32x224xf32, #tpu.memory_space<vmem>>, vector<13x32xf32>,
    %c0_64 = arith.constant 0 : index
    %c0_65 = arith.constant 0 : index
    %105 = vector.load %arg19[%c0_64, %c0_65] : memref<32x224xf32, #tpu.memory_space<vmem>>, vector<32x224xf32>
    %c0_66 = arith.constant 0 : index
    %c0_67 = arith.constant 0 : index
    %106 = vector.load %arg7[%c0_66, %c0_67] : memref<224x64xf32, #tpu.memory_space<vmem>>, vector<224x64xf32>
    %cst_68 = arith.constant dense<0.000000e+00> : vector<32x64xf32>
    %107 = tpu.matmul %105, %106, %cst_68 {dimension_numbers = #tpu.dot_dimension_numbers<[1], [0], [0], [1], [0, 0, 1, 1], [], []>} : vector<32x224xf32>, vector<224x64xf32>, vector<32x64xf32> -> vector<32x64xf32>
    %c0_69 = arith.constant 0 : index
    %c0_70 = arith.constant 0 : index
    %108 = vector.load %arg8[%c0_69, %c0_70] : memref<1x64xf32, #tpu.memory_space<vmem>>, vector<1x64xf32>
    %109 = vector.broadcast %108 : vector<1x64xf32> to vector<32x64xf32>
    %110 = arith.addf %107, %109 : vector<32x64xf32>
    %111 = arith.negf %110 : vector<32x64xf32>
    %112 = math.exp %111 : vector<32x64xf32>
    %cst_71 = arith.constant 1.000000e+00 : f32
    %113 = vector.broadcast %cst_71 : f32 to vector<32x64xf32>
    %114 = arith.addf %113, %112 : vector<32x64xf32>
    %115 = arith.divf %113, %114 : vector<32x64xf32>
    %116 = arith.mulf %110, %115 : vector<32x64xf32>
    %cst_72 = arith.constant 0.000000e+00 : f32
    %117 = vector.broadcast %cst_72 : f32 to vector<32x448xf32>
    %c0_73 = arith.constant 0 : index
    %c0_74 = arith.constant 0 : index
    %118 = vector.load %arg20[%c0_73, %c0_74] : memref<32x448xf32, #tpu.memory_space<vmem>>, vector<32x448xf32>
    tpu.vector_store %arg20[%c0_73, %c0_74], %117 {strides = array<i32>} : memref<32x448xf32, #tpu.memory_space<vmem>>, vector<32x448xf32>,
    %119 = vector.extract_strided_slice %116 {offsets = [0, 0], sizes = [13, 64], strides = [1, 1]} : vector<32x64xf32> to vector<13x64xf32>
    %c3_75 = arith.constant 3 : index
    %c0_76 = arith.constant 0 : index
    %120 = vector.load %arg20[%c3_75, %c0_76] : memref<32x448xf32, #tpu.memory_space<vmem>>, vector<13x64xf32>
    tpu.vector_store %arg20[%c3_75, %c0_76], %119 {strides = array<i32>} : memref<32x448xf32, #tpu.memory_space<vmem>>, vector<13x64xf32>,
    %121 = vector.extract_strided_slice %116 {offsets = [16, 0], sizes = [13, 64], strides = [1, 1]} : vector<32x64xf32> to vector<13x64xf32>
    %c19_77 = arith.constant 19 : index
    %c0_78 = arith.constant 0 : index
    %122 = vector.load %arg20[%c19_77, %c0_78] : memref<32x448xf32, #tpu.memory_space<vmem>>, vector<13x64xf32>
    tpu.vector_store %arg20[%c19_77, %c0_78], %121 {strides = array<i32>} : memref<32x448xf32, #tpu.memory_space<vmem>>, vector<13x64xf32>,
    %123 = vector.extract_strided_slice %116 {offsets = [0, 0], sizes = [14, 64], strides = [1, 1]} : vector<32x64xf32> to vector<14x64xf32>
    %c2_79 = arith.constant 2 : index
    %c64_80 = arith.constant 64 : index
    %124 = vector.load %arg20[%c2_79, %c64_80] : memref<32x448xf32, #tpu.memory_space<vmem>>, vector<14x64xf32>
    tpu.vector_store %arg20[%c2_79, %c64_80], %123 {strides = array<i32>} : memref<32x448xf32, #tpu.memory_space<vmem>>, vector<14x64xf32>,
    %125 = vector.extract_strided_slice %116 {offsets = [16, 0], sizes = [14, 64], strides = [1, 1]} : vector<32x64xf32> to vector<14x64xf32>
    %c18_81 = arith.constant 18 : index
    %c64_82 = arith.constant 64 : index
    %126 = vector.load %arg20[%c18_81, %c64_82] : memref<32x448xf32, #tpu.memory_space<vmem>>, vector<14x64xf32>
    tpu.vector_store %arg20[%c18_81, %c64_82], %125 {strides = array<i32>} : memref<32x448xf32, #tpu.memory_space<vmem>>, vector<14x64xf32>,
    %127 = vector.extract_strided_slice %116 {offsets = [0, 0], sizes = [15, 64], strides = [1, 1]} : vector<32x64xf32> to vector<15x64xf32>
    %c1_83 = arith.constant 1 : index
    %c128_84 = arith.constant 128 : index
    %128 = vector.load %arg20[%c1_83, %c128_84] : memref<32x448xf32, #tpu.memory_space<vmem>>, vector<15x64xf32>
    tpu.vector_store %arg20[%c1_83, %c128_84], %127 {strides = array<i32>} : memref<32x448xf32, #tpu.memory_space<vmem>>, vector<15x64xf32>,
    %129 = vector.extract_strided_slice %116 {offsets = [16, 0], sizes = [15, 64], strides = [1, 1]} : vector<32x64xf32> to vector<15x64xf32>
    %c17_85 = arith.constant 17 : index
    %c128_86 = arith.constant 128 : index
    %130 = vector.load %arg20[%c17_85, %c128_86] : memref<32x448xf32, #tpu.memory_space<vmem>>, vector<15x64xf32>
    tpu.vector_store %arg20[%c17_85, %c128_86], %129 {strides = array<i32>} : memref<32x448xf32, #tpu.memory_space<vmem>>, vector<15x64xf32>,
    %131 = vector.extract_strided_slice %116 {offsets = [0, 0], sizes = [16, 64], strides = [1, 1]} : vector<32x64xf32> to vector<16x64xf32>
    %c0_87 = arith.constant 0 : index
    %c192_88 = arith.constant 192 : index
    %132 = vector.load %arg20[%c0_87, %c192_88] : memref<32x448xf32, #tpu.memory_space<vmem>>, vector<16x64xf32>
    tpu.vector_store %arg20[%c0_87, %c192_88], %131 {strides = array<i32>} : memref<32x448xf32, #tpu.memory_space<vmem>>, vector<16x64xf32>,
    %133 = vector.extract_strided_slice %116 {offsets = [16, 0], sizes = [16, 64], strides = [1, 1]} : vector<32x64xf32> to vector<16x64xf32>
    %c16_89 = arith.constant 16 : index
    %c192_90 = arith.constant 192 : index
    %134 = vector.load %arg20[%c16_89, %c192_90] : memref<32x448xf32, #tpu.memory_space<vmem>>, vector<16x64xf32>
    tpu.vector_store %arg20[%c16_89, %c192_90], %133 {strides = array<i32>} : memref<32x448xf32, #tpu.memory_space<vmem>>, vector<16x64xf32>,
    %135 = vector.extract_strided_slice %116 {offsets = [1, 0], sizes = [15, 64], strides = [1, 1]} : vector<32x64xf32> to vector<15x64xf32>
    %c0_91 = arith.constant 0 : index
    %c256 = arith.constant 256 : index
    %136 = vector.load %arg20[%c0_91, %c256] : memref<32x448xf32, #tpu.memory_space<vmem>>, vector<15x64xf32>
    tpu.vector_store %arg20[%c0_91, %c256], %135 {strides = array<i32>} : memref<32x448xf32, #tpu.memory_space<vmem>>, vector<15x64xf32>,
    %137 = vector.extract_strided_slice %116 {offsets = [17, 0], sizes = [15, 64], strides = [1, 1]} : vector<32x64xf32> to vector<15x64xf32>
    %c16_92 = arith.constant 16 : index
    %c256_93 = arith.constant 256 : index
    %138 = vector.load %arg20[%c16_92, %c256_93] : memref<32x448xf32, #tpu.memory_space<vmem>>, vector<15x64xf32>
    tpu.vector_store %arg20[%c16_92, %c256_93], %137 {strides = array<i32>} : memref<32x448xf32, #tpu.memory_space<vmem>>, vector<15x64xf32>,
    %139 = vector.extract_strided_slice %116 {offsets = [2, 0], sizes = [14, 64], strides = [1, 1]} : vector<32x64xf32> to vector<14x64xf32>
    %c0_94 = arith.constant 0 : index
    %c320 = arith.constant 320 : index
    %140 = vector.load %arg20[%c0_94, %c320] : memref<32x448xf32, #tpu.memory_space<vmem>>, vector<14x64xf32>
    tpu.vector_store %arg20[%c0_94, %c320], %139 {strides = array<i32>} : memref<32x448xf32, #tpu.memory_space<vmem>>, vector<14x64xf32>,
    %141 = vector.extract_strided_slice %116 {offsets = [18, 0], sizes = [14, 64], strides = [1, 1]} : vector<32x64xf32> to vector<14x64xf32>
    %c16_95 = arith.constant 16 : index
    %c320_96 = arith.constant 320 : index
    %142 = vector.load %arg20[%c16_95, %c320_96] : memref<32x448xf32, #tpu.memory_space<vmem>>, vector<14x64xf32>
    tpu.vector_store %arg20[%c16_95, %c320_96], %141 {strides = array<i32>} : memref<32x448xf32, #tpu.memory_space<vmem>>, vector<14x64xf32>,
    %143 = vector.extract_strided_slice %116 {offsets = [3, 0], sizes = [13, 64], strides = [1, 1]} : vector<32x64xf32> to vector<13x64xf32>
    %c0_97 = arith.constant 0 : index
    %c384 = arith.constant 384 : index
    %144 = vector.load %arg20[%c0_97, %c384] : memref<32x448xf32, #tpu.memory_space<vmem>>, vector<13x64xf32>
    tpu.vector_store %arg20[%c0_97, %c384], %143 {strides = array<i32>} : memref<32x448xf32, #tpu.memory_space<vmem>>, vector<13x64xf32>,
    %145 = vector.extract_strided_slice %116 {offsets = [19, 0], sizes = [13, 64], strides = [1, 1]} : vector<32x64xf32> to vector<13x64xf32>
    %c16_98 = arith.constant 16 : index
    %c384_99 = arith.constant 384 : index
    %146 = vector.load %arg20[%c16_98, %c384_99] : memref<32x448xf32, #tpu.memory_space<vmem>>, vector<13x64xf32>
    tpu.vector_store %arg20[%c16_98, %c384_99], %145 {strides = array<i32>} : memref<32x448xf32, #tpu.memory_space<vmem>>, vector<13x64xf32>,
    %c0_100 = arith.constant 0 : index
    %c0_101 = arith.constant 0 : index
    %147 = vector.load %arg20[%c0_100, %c0_101] : memref<32x448xf32, #tpu.memory_space<vmem>>, vector<32x448xf32>
    %c0_102 = arith.constant 0 : index
    %c0_103 = arith.constant 0 : index
    %148 = vector.load %arg9[%c0_102, %c0_103] : memref<448x64xf32, #tpu.memory_space<vmem>>, vector<448x64xf32>
    %cst_104 = arith.constant dense<0.000000e+00> : vector<32x64xf32>
    %149 = tpu.matmul %147, %148, %cst_104 {dimension_numbers = #tpu.dot_dimension_numbers<[1], [0], [0], [1], [0, 0, 1, 1], [], []>} : vector<32x448xf32>, vector<448x64xf32>, vector<32x64xf32> -> vector<32x64xf32>
    %c0_105 = arith.constant 0 : index
    %c0_106 = arith.constant 0 : index
    %150 = vector.load %arg10[%c0_105, %c0_106] : memref<1x64xf32, #tpu.memory_space<vmem>>, vector<1x64xf32>
    %151 = vector.broadcast %150 : vector<1x64xf32> to vector<32x64xf32>
    %152 = arith.addf %149, %151 : vector<32x64xf32>
    %153 = arith.negf %152 : vector<32x64xf32>
    %154 = math.exp %153 : vector<32x64xf32>
    %cst_107 = arith.constant 1.000000e+00 : f32
    %155 = vector.broadcast %cst_107 : f32 to vector<32x64xf32>
    %156 = arith.addf %155, %154 : vector<32x64xf32>
    %157 = arith.divf %155, %156 : vector<32x64xf32>
    %158 = arith.mulf %152, %157 : vector<32x64xf32>
    %cst_108 = arith.constant 0.000000e+00 : f32
    %159 = vector.broadcast %cst_108 : f32 to vector<32x448xf32>
    %c0_109 = arith.constant 0 : index
    %c0_110 = arith.constant 0 : index
    %160 = vector.load %arg21[%c0_109, %c0_110] : memref<32x448xf32, #tpu.memory_space<vmem>>, vector<32x448xf32>
    tpu.vector_store %arg21[%c0_109, %c0_110], %159 {strides = array<i32>} : memref<32x448xf32, #tpu.memory_space<vmem>>, vector<32x448xf32>,
    %161 = vector.extract_strided_slice %158 {offsets = [0, 0], sizes = [13, 64], strides = [1, 1]} : vector<32x64xf32> to vector<13x64xf32>
    %c3_111 = arith.constant 3 : index
    %c0_112 = arith.constant 0 : index
    %162 = vector.load %arg21[%c3_111, %c0_112] : memref<32x448xf32, #tpu.memory_space<vmem>>, vector<13x64xf32>
    tpu.vector_store %arg21[%c3_111, %c0_112], %161 {strides = array<i32>} : memref<32x448xf32, #tpu.memory_space<vmem>>, vector<13x64xf32>,
    %163 = vector.extract_strided_slice %158 {offsets = [16, 0], sizes = [13, 64], strides = [1, 1]} : vector<32x64xf32> to vector<13x64xf32>
    %c19_113 = arith.constant 19 : index
    %c0_114 = arith.constant 0 : index
    %164 = vector.load %arg21[%c19_113, %c0_114] : memref<32x448xf32, #tpu.memory_space<vmem>>, vector<13x64xf32>
    tpu.vector_store %arg21[%c19_113, %c0_114], %163 {strides = array<i32>} : memref<32x448xf32, #tpu.memory_space<vmem>>, vector<13x64xf32>,
    %165 = vector.extract_strided_slice %158 {offsets = [0, 0], sizes = [14, 64], strides = [1, 1]} : vector<32x64xf32> to vector<14x64xf32>
    %c2_115 = arith.constant 2 : index
    %c64_116 = arith.constant 64 : index
    %166 = vector.load %arg21[%c2_115, %c64_116] : memref<32x448xf32, #tpu.memory_space<vmem>>, vector<14x64xf32>
    tpu.vector_store %arg21[%c2_115, %c64_116], %165 {strides = array<i32>} : memref<32x448xf32, #tpu.memory_space<vmem>>, vector<14x64xf32>,
    %167 = vector.extract_strided_slice %158 {offsets = [16, 0], sizes = [14, 64], strides = [1, 1]} : vector<32x64xf32> to vector<14x64xf32>
    %c18_117 = arith.constant 18 : index
    %c64_118 = arith.constant 64 : index
    %168 = vector.load %arg21[%c18_117, %c64_118] : memref<32x448xf32, #tpu.memory_space<vmem>>, vector<14x64xf32>
    tpu.vector_store %arg21[%c18_117, %c64_118], %167 {strides = array<i32>} : memref<32x448xf32, #tpu.memory_space<vmem>>, vector<14x64xf32>,
    %169 = vector.extract_strided_slice %158 {offsets = [0, 0], sizes = [15, 64], strides = [1, 1]} : vector<32x64xf32> to vector<15x64xf32>
    %c1_119 = arith.constant 1 : index
    %c128_120 = arith.constant 128 : index
    %170 = vector.load %arg21[%c1_119, %c128_120] : memref<32x448xf32, #tpu.memory_space<vmem>>, vector<15x64xf32>
    tpu.vector_store %arg21[%c1_119, %c128_120], %169 {strides = array<i32>} : memref<32x448xf32, #tpu.memory_space<vmem>>, vector<15x64xf32>,
    %171 = vector.extract_strided_slice %158 {offsets = [16, 0], sizes = [15, 64], strides = [1, 1]} : vector<32x64xf32> to vector<15x64xf32>
    %c17_121 = arith.constant 17 : index
    %c128_122 = arith.constant 128 : index
    %172 = vector.load %arg21[%c17_121, %c128_122] : memref<32x448xf32, #tpu.memory_space<vmem>>, vector<15x64xf32>
    tpu.vector_store %arg21[%c17_121, %c128_122], %171 {strides = array<i32>} : memref<32x448xf32, #tpu.memory_space<vmem>>, vector<15x64xf32>,
    %173 = vector.extract_strided_slice %158 {offsets = [0, 0], sizes = [16, 64], strides = [1, 1]} : vector<32x64xf32> to vector<16x64xf32>
    %c0_123 = arith.constant 0 : index
    %c192_124 = arith.constant 192 : index
    %174 = vector.load %arg21[%c0_123, %c192_124] : memref<32x448xf32, #tpu.memory_space<vmem>>, vector<16x64xf32>
    tpu.vector_store %arg21[%c0_123, %c192_124], %173 {strides = array<i32>} : memref<32x448xf32, #tpu.memory_space<vmem>>, vector<16x64xf32>,
    %175 = vector.extract_strided_slice %158 {offsets = [16, 0], sizes = [16, 64], strides = [1, 1]} : vector<32x64xf32> to vector<16x64xf32>
    %c16_125 = arith.constant 16 : index
    %c192_126 = arith.constant 192 : index
    %176 = vector.load %arg21[%c16_125, %c192_126] : memref<32x448xf32, #tpu.memory_space<vmem>>, vector<16x64xf32>
    tpu.vector_store %arg21[%c16_125, %c192_126], %175 {strides = array<i32>} : memref<32x448xf32, #tpu.memory_space<vmem>>, vector<16x64xf32>,
    %177 = vector.extract_strided_slice %158 {offsets = [1, 0], sizes = [15, 64], strides = [1, 1]} : vector<32x64xf32> to vector<15x64xf32>
    %c0_127 = arith.constant 0 : index
    %c256_128 = arith.constant 256 : index
    %178 = vector.load %arg21[%c0_127, %c256_128] : memref<32x448xf32, #tpu.memory_space<vmem>>, vector<15x64xf32>
    tpu.vector_store %arg21[%c0_127, %c256_128], %177 {strides = array<i32>} : memref<32x448xf32, #tpu.memory_space<vmem>>, vector<15x64xf32>,
    %179 = vector.extract_strided_slice %158 {offsets = [17, 0], sizes = [15, 64], strides = [1, 1]} : vector<32x64xf32> to vector<15x64xf32>
    %c16_129 = arith.constant 16 : index
    %c256_130 = arith.constant 256 : index
    %180 = vector.load %arg21[%c16_129, %c256_130] : memref<32x448xf32, #tpu.memory_space<vmem>>, vector<15x64xf32>
    tpu.vector_store %arg21[%c16_129, %c256_130], %179 {strides = array<i32>} : memref<32x448xf32, #tpu.memory_space<vmem>>, vector<15x64xf32>,
    %181 = vector.extract_strided_slice %158 {offsets = [2, 0], sizes = [14, 64], strides = [1, 1]} : vector<32x64xf32> to vector<14x64xf32>
    %c0_131 = arith.constant 0 : index
    %c320_132 = arith.constant 320 : index
    %182 = vector.load %arg21[%c0_131, %c320_132] : memref<32x448xf32, #tpu.memory_space<vmem>>, vector<14x64xf32>
    tpu.vector_store %arg21[%c0_131, %c320_132], %181 {strides = array<i32>} : memref<32x448xf32, #tpu.memory_space<vmem>>, vector<14x64xf32>,
    %183 = vector.extract_strided_slice %158 {offsets = [18, 0], sizes = [14, 64], strides = [1, 1]} : vector<32x64xf32> to vector<14x64xf32>
    %c16_133 = arith.constant 16 : index
    %c320_134 = arith.constant 320 : index
    %184 = vector.load %arg21[%c16_133, %c320_134] : memref<32x448xf32, #tpu.memory_space<vmem>>, vector<14x64xf32>
    tpu.vector_store %arg21[%c16_133, %c320_134], %183 {strides = array<i32>} : memref<32x448xf32, #tpu.memory_space<vmem>>, vector<14x64xf32>,
    %185 = vector.extract_strided_slice %158 {offsets = [3, 0], sizes = [13, 64], strides = [1, 1]} : vector<32x64xf32> to vector<13x64xf32>
    %c0_135 = arith.constant 0 : index
    %c384_136 = arith.constant 384 : index
    %186 = vector.load %arg21[%c0_135, %c384_136] : memref<32x448xf32, #tpu.memory_space<vmem>>, vector<13x64xf32>
    tpu.vector_store %arg21[%c0_135, %c384_136], %185 {strides = array<i32>} : memref<32x448xf32, #tpu.memory_space<vmem>>, vector<13x64xf32>,
    %187 = vector.extract_strided_slice %158 {offsets = [19, 0], sizes = [13, 64], strides = [1, 1]} : vector<32x64xf32> to vector<13x64xf32>
    %c16_137 = arith.constant 16 : index
    %c384_138 = arith.constant 384 : index
    %188 = vector.load %arg21[%c16_137, %c384_138] : memref<32x448xf32, #tpu.memory_space<vmem>>, vector<13x64xf32>
    tpu.vector_store %arg21[%c16_137, %c384_138], %187 {strides = array<i32>} : memref<32x448xf32, #tpu.memory_space<vmem>>, vector<13x64xf32>,
    %c0_139 = arith.constant 0 : index
    %c0_140 = arith.constant 0 : index
    %189 = vector.load %arg21[%c0_139, %c0_140] : memref<32x448xf32, #tpu.memory_space<vmem>>, vector<32x448xf32>
    %c0_141 = arith.constant 0 : index
    %c0_142 = arith.constant 0 : index
    %190 = vector.load %arg11[%c0_141, %c0_142] : memref<448x64xf32, #tpu.memory_space<vmem>>, vector<448x64xf32>
    %cst_143 = arith.constant dense<0.000000e+00> : vector<32x64xf32>
    %191 = tpu.matmul %189, %190, %cst_143 {dimension_numbers = #tpu.dot_dimension_numbers<[1], [0], [0], [1], [0, 0, 1, 1], [], []>} : vector<32x448xf32>, vector<448x64xf32>, vector<32x64xf32> -> vector<32x64xf32>
    %c0_144 = arith.constant 0 : index
    %c0_145 = arith.constant 0 : index
    %192 = vector.load %arg12[%c0_144, %c0_145] : memref<1x64xf32, #tpu.memory_space<vmem>>, vector<1x64xf32>
    %193 = vector.broadcast %192 : vector<1x64xf32> to vector<32x64xf32>
    %194 = arith.addf %191, %193 : vector<32x64xf32>
    %195 = arith.negf %194 : vector<32x64xf32>
    %196 = math.exp %195 : vector<32x64xf32>
    %cst_146 = arith.constant 1.000000e+00 : f32
    %197 = vector.broadcast %cst_146 : f32 to vector<32x64xf32>
    %198 = arith.addf %197, %196 : vector<32x64xf32>
    %199 = arith.divf %197, %198 : vector<32x64xf32>
    %200 = arith.mulf %194, %199 : vector<32x64xf32>
    %c0_147 = arith.constant 0 : index
    %c0_148 = arith.constant 0 : index
    %201 = vector.load %arg2[%c0_147, %c0_148] : memref<2x32xf32, #tpu.memory_space<vmem>>, vector<2x32xf32>
    %cst_149 = arith.constant dense<0.000000e+00> : vector<2x64xf32>
    %202 = tpu.matmul %201, %200, %cst_149 {dimension_numbers = #tpu.dot_dimension_numbers<[1], [0], [0], [1], [0, 0, 1, 1], [], []>} : vector<2x32xf32>, vector<32x64xf32>, vector<2x64xf32> -> vector<2x64xf32>
    %c0_150 = arith.constant 0 : index
    %c0_151 = arith.constant 0 : index
    %203 = vector.load %arg13[%c0_150, %c0_151] : memref<64x128xf32, #tpu.memory_space<vmem>>, vector<64x128xf32>
    %cst_152 = arith.constant dense<0.000000e+00> : vector<2x128xf32>
    %204 = tpu.matmul %202, %203, %cst_152 {dimension_numbers = #tpu.dot_dimension_numbers<[1], [0], [0], [1], [0, 0, 1, 1], [], []>} : vector<2x64xf32>, vector<64x128xf32>, vector<2x128xf32> -> vector<2x128xf32>
    %c0_153 = arith.constant 0 : index
    %c0_154 = arith.constant 0 : index
    %205 = vector.load %arg14[%c0_153, %c0_154] : memref<1x128xf32, #tpu.memory_space<vmem>>, vector<1x128xf32>
    %206 = vector.broadcast %205 : vector<1x128xf32> to vector<2x128xf32>
    %207 = arith.addf %204, %206 : vector<2x128xf32>
    %208 = arith.negf %207 : vector<2x128xf32>
    %209 = math.exp %208 : vector<2x128xf32>
    %cst_155 = arith.constant 1.000000e+00 : f32
    %210 = vector.broadcast %cst_155 : f32 to vector<2x128xf32>
    %211 = arith.addf %210, %209 : vector<2x128xf32>
    %212 = arith.divf %210, %211 : vector<2x128xf32>
    %213 = arith.mulf %207, %212 : vector<2x128xf32>
    %cst_156 = arith.constant dense<0.000000e+00> : vector<2xf32>
    %214 = vector.multi_reduction <add>, %213, %cst_156 [1] : vector<2x128xf32> to vector<2xf32>
    %215 = vector.shape_cast %214 : vector<2xf32> to vector<2x1xf32>
    %cst_157 = arith.constant 1.280000e+02 : f32
    %216 = vector.broadcast %cst_157 : f32 to vector<2x1xf32>
    %217 = arith.divf %215, %216 : vector<2x1xf32>
    %218 = vector.broadcast %217 : vector<2x1xf32> to vector<2x128xf32>
    %219 = arith.subf %213, %218 : vector<2x128xf32>
    %220 = arith.mulf %219, %219 : vector<2x128xf32>
    %cst_158 = arith.constant dense<0.000000e+00> : vector<2xf32>
    %221 = vector.multi_reduction <add>, %220, %cst_158 [1] : vector<2x128xf32> to vector<2xf32>
    %222 = vector.shape_cast %221 : vector<2xf32> to vector<2x1xf32>
    %cst_159 = arith.constant 1.280000e+02 : f32
    %223 = vector.broadcast %cst_159 : f32 to vector<2x1xf32>
    %224 = arith.divf %222, %223 : vector<2x1xf32>
    %225 = vector.broadcast %217 : vector<2x1xf32> to vector<2x128xf32>
    %226 = arith.subf %213, %225 : vector<2x128xf32>
    %cst_160 = arith.constant 9.99999974E-6 : f32
    %227 = vector.broadcast %cst_160 : f32 to vector<2x1xf32>
    %228 = arith.addf %224, %227 : vector<2x1xf32>
    %229 = math.rsqrt %228 : vector<2x1xf32>
    %230 = vector.broadcast %229 : vector<2x1xf32> to vector<2x128xf32>
    %231 = arith.mulf %226, %230 : vector<2x128xf32>
    %c0_161 = arith.constant 0 : index
    %c0_162 = arith.constant 0 : index
    %232 = vector.load %arg15[%c0_161, %c0_162] : memref<1x128xf32, #tpu.memory_space<vmem>>, vector<1x128xf32>
    %233 = vector.broadcast %232 : vector<1x128xf32> to vector<2x128xf32>
    %234 = arith.mulf %231, %233 : vector<2x128xf32>
    %c0_163 = arith.constant 0 : index
    %c0_164 = arith.constant 0 : index
    %235 = vector.load %arg16[%c0_163, %c0_164] : memref<1x128xf32, #tpu.memory_space<vmem>>, vector<1x128xf32>
    %236 = vector.broadcast %235 : vector<1x128xf32> to vector<2x128xf32>
    %237 = arith.addf %234, %236 : vector<2x128xf32>
    %c0_165 = arith.constant 0 : index
    %c0_166 = arith.constant 0 : index
    %238 = vector.load %arg17[%c0_165, %c0_166] : memref<2x128xf32, #tpu.memory_space<vmem>>, vector<2x128xf32>
    tpu.vector_store %arg17[%c0_165, %c0_166], %237 {strides = array<i32>} : memref<2x128xf32, #tpu.memory_space<vmem>>, vector<2x128xf32>,
    return
  }
}

</mosaic_0001>

<llo_original>
// kernel: tpu_custom_call.1
$region0: #{tpu_custom_call.1}
  #allocation0 [shape = 'u32[]', space=smem, size = 0x4, offset = 0x4, fixed_abs, tag = 'smem constant byte address 0x4 - core index']
  #allocation1 [shape = 'u32[144,128]{1,0:T(1,128)}', space=vmem, size = 0x12000, scoped, tag = 'internal scratch']
  #allocation2 [shape = 'f32[32,224]{1,0:T(8,128)}', space=vmem, size = 0x8000, scoped, tag = 'scratch operand']
  #allocation3 [shape = 'f32[32,224]{1,0:T(8,128)}', space=vmem, size = 0x8000, scoped, tag = 'scratch operand']
  #allocation4 [shape = 'f32[32,448]{1,0:T(8,128)}', space=vmem, size = 0x10000, scoped, tag = 'scratch operand']
  #allocation5 [shape = 'f32[32,448]{1,0:T(8,128)}', space=vmem, size = 0x10000, scoped, tag = 'scratch operand']
  %s0 = inlined_call_operand.vmem [shape: f32[32,4], index: 0, kind: input, shape index: {}]
  %s1 = inlined_call_operand.vmem [shape: f32[32,1], index: 1, kind: input, shape index: {}]
  %s2 = inlined_call_operand.vmem [shape: f32[2,32], index: 2, kind: input, shape index: {}]
  %s3 = inlined_call_operand.vmem [shape: f32[4,32], index: 3, kind: input, shape index: {}]
  %s4 = inlined_call_operand.vmem [shape: f32[1,32], index: 4, kind: input, shape index: {}]
  %s5 = inlined_call_operand.vmem [shape: f32[224,32], index: 5, kind: input, shape index: {}]
  %s6 = inlined_call_operand.vmem [shape: f32[1,32], index: 6, kind: input, shape index: {}]
  %s7 = inlined_call_operand.vmem [shape: f32[224,64], index: 7, kind: input, shape index: {}]
  %s8 = inlined_call_operand.vmem [shape: f32[1,64], index: 8, kind: input, shape index: {}]
  %s9 = inlined_call_operand.vmem [shape: f32[448,64], index: 9, kind: input, shape index: {}]
  %s10 = inlined_call_operand.vmem [shape: f32[1,64], index: 10, kind: input, shape index: {}]
  %s11 = inlined_call_operand.vmem [shape: f32[448,64], index: 11, kind: input, shape index: {}]
  %s12 = inlined_call_operand.vmem [shape: f32[1,64], index: 12, kind: input, shape index: {}]
  %s13 = inlined_call_operand.vmem [shape: f32[64,128], index: 13, kind: input, shape index: {}]
  %s14 = inlined_call_operand.vmem [shape: f32[1,128], index: 14, kind: input, shape index: {}]
  %s15 = inlined_call_operand.vmem [shape: f32[1,128], index: 15, kind: input, shape index: {}]
  %s16 = inlined_call_operand.vmem [shape: f32[1,128], index: 16, kind: input, shape index: {}]
  %s17 = inlined_call_operand.hbm [shape: f32[2,128], index: 17, kind: output, shape index: {}]
  %s18 = sld [smem:[#allocation0]]
  $region78: #{tpu_custom_call.1} parent=0
    _
  %s20 = ssub.s32 1, %s18
  %s21 = scalar_select 0, %s20, %s18
  $region1: #{tpu_custom_call.1} parent=0
    #allocation6 [shape = 'u8[1024]{0}', space=vmem, size = 0x400, scoped, tag = 'output window, operand 0, single buffered']
    #allocation7 [shape = 's32[1]{0}', space=sflag, size = 0x4, scoped, tag = 'scoped memory for tpu_custom_call.1']
    %22 = vsyncpa [#allocation7], 0
    // Predicated region
    $region2: #{tpu_custom_call.1} parent=1 // pred_check
      _
    $region3: #{tpu_custom_call.1} parent=1 // pred_check_branch
      %24 = sbr.rel (0) target = $region5
    $region4: #{tpu_custom_call.1} parent=1 // pred_region
      _
    $region5: #{tpu_custom_call.1} parent=1 // pred_fallthru
      _
    // Predicated region
    $region6: #{tpu_custom_call.1} parent=1 // pred_check
      _
    $region7: #{tpu_custom_call.1} parent=1 // pred_check_branch
      %26 = sbr.rel (0) target = $region9
    $region8: #{tpu_custom_call.1} parent=1 // pred_region
      _
    $region9: #{tpu_custom_call.1} parent=1 // pred_fallthru
      _
    // Predicated region
    $region10: #{tpu_custom_call.1} parent=1 // pred_check
      _
    $region11: #{tpu_custom_call.1} parent=1 // pred_check_branch
      %28 = sbr.rel (0) target = $region13
    $region12: #{tpu_custom_call.1} parent=1 // pred_region
      _
    $region13: #{tpu_custom_call.1} parent=1 // pred_fallthru
      _
    // Predicated region
    $region14: #{tpu_custom_call.1} parent=1 // pred_check
      _
    $region15: #{tpu_custom_call.1} parent=1 // pred_check_branch
      %30 = sbr.rel (0) target = $region17
    $region16: #{tpu_custom_call.1} parent=1 // pred_region
      _
    $region17: #{tpu_custom_call.1} parent=1 // pred_fallthru
      _
    // Predicated region
    $region18: #{tpu_custom_call.1} parent=1 // pred_check
      _
    $region19: #{tpu_custom_call.1} parent=1 // pred_check_branch
      %32 = sbr.rel (0) target = $region21
    $region20: #{tpu_custom_call.1} parent=1 // pred_region
      _
    $region21: #{tpu_custom_call.1} parent=1 // pred_fallthru
      _
    // Predicated region
    $region22: #{tpu_custom_call.1} parent=1 // pred_check
      _
    $region23: #{tpu_custom_call.1} parent=1 // pred_check_branch
      %34 = sbr.rel (0) target = $region25
    $region24: #{tpu_custom_call.1} parent=1 // pred_region
      _
    $region25: #{tpu_custom_call.1} parent=1 // pred_fallthru
      _
    // Predicated region
    $region26: #{tpu_custom_call.1} parent=1 // pred_check
      _
    $region27: #{tpu_custom_call.1} parent=1 // pred_check_branch
      %36 = sbr.rel (0) target = $region29
    $region28: #{tpu_custom_call.1} parent=1 // pred_region
      _
    $region29: #{tpu_custom_call.1} parent=1 // pred_fallthru
      _
    // Predicated region
    $region30: #{tpu_custom_call.1} parent=1 // pred_check
      _
    $region31: #{tpu_custom_call.1} parent=1 // pred_check_branch
      %38 = sbr.rel (0) target = $region33
    $region32: #{tpu_custom_call.1} parent=1 // pred_region
      _
    $region33: #{tpu_custom_call.1} parent=1 // pred_fallthru
      _
    // Predicated region
    $region34: #{tpu_custom_call.1} parent=1 // pred_check
      _
    $region35: #{tpu_custom_call.1} parent=1 // pred_check_branch
      %40 = sbr.rel (0) target = $region37
    $region36: #{tpu_custom_call.1} parent=1 // pred_region
      _
    $region37: #{tpu_custom_call.1} parent=1 // pred_fallthru
      _
    // Predicated region
    $region38: #{tpu_custom_call.1} parent=1 // pred_check
      _
    $region39: #{tpu_custom_call.1} parent=1 // pred_check_branch
      %42 = sbr.rel (0) target = $region41
    $region40: #{tpu_custom_call.1} parent=1 // pred_region
      _
    $region41: #{tpu_custom_call.1} parent=1 // pred_fallthru
      _
    // Predicated region
    $region42: #{tpu_custom_call.1} parent=1 // pred_check
      _
    $region43: #{tpu_custom_call.1} parent=1 // pred_check_branch
      %44 = sbr.rel (0) target = $region45
    $region44: #{tpu_custom_call.1} parent=1 // pred_region
      _
    $region45: #{tpu_custom_call.1} parent=1 // pred_fallthru
      _
    // Predicated region
    $region46: #{tpu_custom_call.1} parent=1 // pred_check
      _
    $region47: #{tpu_custom_call.1} parent=1 // pred_check_branch
      %46 = sbr.rel (0) target = $region49
    $region48: #{tpu_custom_call.1} parent=1 // pred_region
      _
    $region49: #{tpu_custom_call.1} parent=1 // pred_fallthru
      _
    // Predicated region
    $region50: #{tpu_custom_call.1} parent=1 // pred_check
      _
    $region51: #{tpu_custom_call.1} parent=1 // pred_check_branch
      %48 = sbr.rel (0) target = $region53
    $region52: #{tpu_custom_call.1} parent=1 // pred_region
      _
    $region53: #{tpu_custom_call.1} parent=1 // pred_fallthru
      _
    // Predicated region
    $region54: #{tpu_custom_call.1} parent=1 // pred_check
      _
    $region55: #{tpu_custom_call.1} parent=1 // pred_check_branch
      %50 = sbr.rel (0) target = $region57
    $region56: #{tpu_custom_call.1} parent=1 // pred_region
      _
    $region57: #{tpu_custom_call.1} parent=1 // pred_fallthru
      _
    // Predicated region
    $region58: #{tpu_custom_call.1} parent=1 // pred_check
      _
    $region59: #{tpu_custom_call.1} parent=1 // pred_check_branch
      %52 = sbr.rel (0) target = $region61
    $region60: #{tpu_custom_call.1} parent=1 // pred_region
      _
    $region61: #{tpu_custom_call.1} parent=1 // pred_fallthru
      _
    // Predicated region
    $region62: #{tpu_custom_call.1} parent=1 // pred_check
      _
    $region63: #{tpu_custom_call.1} parent=1 // pred_check_branch
      %54 = sbr.rel (0) target = $region65
    $region64: #{tpu_custom_call.1} parent=1 // pred_region
      _
    $region65: #{tpu_custom_call.1} parent=1 // pred_fallthru
      _
    // Predicated region
    $region66: #{tpu_custom_call.1} parent=1 // pred_check
      _
    $region67: #{tpu_custom_call.1} parent=1 // pred_check_branch
      %56 = sbr.rel (0) target = $region69
    $region68: #{tpu_custom_call.1} parent=1 // pred_region
      _
    $region69: #{tpu_custom_call.1} parent=1 // pred_fallthru
      _
    %v57 = vld [vmem:[%s0] sm:$0xff]
    %v58 = vld [vmem:[%s0 + $0x8] sm:$0xff]
    %v59 = vld [vmem:[%s0 + $0x10] sm:$0xff]
    %v60 = vld [vmem:[%s0 + $0x18] sm:$0xff]
    %v61 = vld [vmem:[%s3] sm:$0xf]
    %63 = vset.pattern.permute.xlu0 0
    %64 = vperm.xlu0 %63, %v57
    %v65 = vpop.permute.xlu0 %64
    %68 = vset.pattern.permute.xlu0 0
    %69 = vperm.xlu0 %68, %v58
    %v70 = vpop.permute.xlu0 %69
    %73 = vset.pattern.permute.xlu0 0
    %74 = vperm.xlu0 %73, %v59
    %v75 = vpop.permute.xlu0 %74
    %78 = vset.pattern.permute.xlu0 0
    %79 = vperm.xlu0 %78, %v60
    %v80 = vpop.permute.xlu0 %79
    %v82 = vlaneseq
    %v83 = vshrl.u32 %v82, 7
    %v84 = vsub.s32 0, %v83
    %v85 = vrot.slane %v61, %v84
    %v86 = vmul.f32 %v65, %v85
    %v87 = vmul.f32 %v70, %v85
    %v88 = vmul.f32 %v75, %v85
    %v89 = vmul.f32 %v80, %v85
    %v90 = vadd.f32 %v86, 0.0
    %v91 = vadd.f32 %v87, 0.0
    %v92 = vadd.f32 %v88, 0.0
    %v93 = vadd.f32 %v89, 0.0
    %94 = vset.pattern.permute.xlu0 1
    %95 = vperm.xlu0 %94, %v57
    %v96 = vpop.permute.xlu0 %95
    %98 = vset.pattern.permute.xlu0 1
    %99 = vperm.xlu0 %98, %v58
    %v100 = vpop.permute.xlu0 %99
    %102 = vset.pattern.permute.xlu0 1
    %103 = vperm.xlu0 %102, %v59
    %v104 = vpop.permute.xlu0 %103
    %106 = vset.pattern.permute.xlu0 1
    %107 = vperm.xlu0 %106, %v60
    %v108 = vpop.permute.xlu0 %107
    %v110 = vlaneseq
    %v111 = vshrl.u32 %v110, 7
    %v112 = vsub.s32 1, %v111
    %v113 = vrot.slane %v61, %v112
    %v114 = vmul.f32 %v96, %v113
    %v115 = vmul.f32 %v100, %v113
    %v116 = vmul.f32 %v104, %v113
    %v117 = vmul.f32 %v108, %v113
    %v118 = vadd.f32 %v90, %v114
    %v119 = vadd.f32 %v91, %v115
    %v120 = vadd.f32 %v92, %v116
    %v121 = vadd.f32 %v93, %v117
    %122 = vset.pattern.permute.xlu0 2
    %123 = vperm.xlu0 %122, %v57
    %v124 = vpop.permute.xlu0 %123
    %126 = vset.pattern.permute.xlu0 2
    %127 = vperm.xlu0 %126, %v58
    %v128 = vpop.permute.xlu0 %127
    %130 = vset.pattern.permute.xlu0 2
    %131 = vperm.xlu0 %130, %v59
    %v132 = vpop.permute.xlu0 %131
    %134 = vset.pattern.permute.xlu0 2
    %135 = vperm.xlu0 %134, %v60
    %v136 = vpop.permute.xlu0 %135
    %v138 = vlaneseq
    %v139 = vshrl.u32 %v138, 7
    %v140 = vsub.s32 2, %v139
    %v141 = vrot.slane %v61, %v140
    %v142 = vmul.f32 %v124, %v141
    %v143 = vmul.f32 %v128, %v141
    %v144 = vmul.f32 %v132, %v141
    %v145 = vmul.f32 %v136, %v141
    %v146 = vadd.f32 %v118, %v142
    %v147 = vadd.f32 %v119, %v143
    %v148 = vadd.f32 %v120, %v144
    %v149 = vadd.f32 %v121, %v145
    %150 = vset.pattern.permute.xlu0 3
    %151 = vperm.xlu0 %150, %v57
    %v152 = vpop.permute.xlu0 %151
    %154 = vset.pattern.permute.xlu0 3
    %155 = vperm.xlu0 %154, %v58
    %v156 = vpop.permute.xlu0 %155
    %158 = vset.pattern.permute.xlu0 3
    %159 = vperm.xlu0 %158, %v59
    %v160 = vpop.permute.xlu0 %159
    %162 = vset.pattern.permute.xlu0 3
    %163 = vperm.xlu0 %162, %v60
    %v164 = vpop.permute.xlu0 %163
    %v166 = vlaneseq
    %v167 = vshrl.u32 %v166, 7
    %v168 = vsub.s32 3, %v167
    %v169 = vrot.slane %v61, %v168
    %v170 = vmul.f32 %v152, %v169
    %v171 = vmul.f32 %v156, %v169
    %v172 = vmul.f32 %v160, %v169
    %v173 = vmul.f32 %v164, %v169
    %v174 = vadd.f32 %v146, %v170
    %v175 = vadd.f32 %v147, %v171
    %v176 = vadd.f32 %v148, %v172
    %v177 = vadd.f32 %v149, %v173
    %v178 = vld [vmem:[%s4] sm:$0x1]
    %v180 = vlaneseq
    %v181 = vshrl.u32 %v180, 7
    %v182 = vsub.s32 0, %v181
    %v183 = vrot.slane %v178, %v182
    %v185 = vadd.f32 %v174, %v183
    %v186 = vadd.f32 %v175, %v183
    %v187 = vadd.f32 %v176, %v183
    %v188 = vadd.f32 %v177, %v183
    %v189 = vld [vmem:[%s1] sm:$0xff]
    %v190 = vld [vmem:[%s1 + $0x8] sm:$0xff]
    %v191 = vld [vmem:[%s1 + $0x10] sm:$0xff]
    %v192 = vld [vmem:[%s1 + $0x18] sm:$0xff]
    %194 = vset.pattern.permute.xlu0 0
    %195 = vperm.xlu0 %194, %v189
    %v196 = vpop.permute.xlu0 %195
    %199 = vset.pattern.permute.xlu0 0
    %200 = vperm.xlu0 %199, %v190
    %v201 = vpop.permute.xlu0 %200
    %204 = vset.pattern.permute.xlu0 0
    %205 = vperm.xlu0 %204, %v191
    %v206 = vpop.permute.xlu0 %205
    %209 = vset.pattern.permute.xlu0 0
    %210 = vperm.xlu0 %209, %v192
    %v211 = vpop.permute.xlu0 %210
    %v213 = vmul.f32 %v185, %v196
    %v214 = vmul.f32 %v186, %v201
    %v215 = vmul.f32 %v187, %v206
    %v216 = vmul.f32 %v188, %v211
    %217 = vst [vmem:[#allocation2] sm:$0xff] 0.0
    %vm218 = vcmask 785408
    %219 = vst.msk [vmem:[#allocation2 + $0x8] sm:$0xff] %vm218, 0.0
    %220 = vst [vmem:[#allocation2 + $0x10] sm:$0xff] 0.0
    %221 = vst.msk [vmem:[#allocation2 + $0x18] sm:$0xff] %vm218, 0.0
    %222 = vst [vmem:[#allocation2 + $0x20] sm:$0xff] 0.0
    %223 = vst.msk [vmem:[#allocation2 + $0x28] sm:$0xff] %vm218, 0.0
    %224 = vst [vmem:[#allocation2 + $0x30] sm:$0xff] 0.0
    %225 = vst.msk [vmem:[#allocation2 + $0x38] sm:$0xff] %vm218, 0.0
    %vm228 = vcmask 1042432
    %v229 = vrot.slane %v213, 5
    %v230 = vrot.slane %v214, 5
    %v231 = vsel %vm228, %v229, %v230
    %vm234 = vcmask 261123
    %235 = vst.msk [vmem:[#allocation2] sm:$0xf8] %vm234, %v229
    %vm236 = vcmask 261120
    %237 = vst.msk [vmem:[#allocation2 + $0x10] sm:$0xff] %vm236, %v231
    %v240 = vrot.slane %v215, 5
    %v241 = vrot.slane %v216, 5
    %v242 = vsel %vm228, %v240, %v241
    %245 = vst.msk [vmem:[#allocation2 + $0x20] sm:$0xf8] %vm234, %v240
    %246 = vst.msk [vmem:[#allocation2 + $0x30] sm:$0xff] %vm236, %v242
    %vm247 = vcmask 1041408
    %v248 = vrot.slane %v213, 6
    %v249 = vrot.slane %v214, 6
    %v250 = vsel %vm247, %v248, %v249
    %251 = vrot.lane.b32.xlu0 %v248, 32
    %v252 = vpop.permute.xlu0 %251
    %253 = vrot.lane.b32.xlu0 %v250, 32
    %v254 = vpop.permute.xlu0 %253
    %vm257 = vcmask 523522
    %258 = vst.msk [vmem:[#allocation2] sm:$0xfc] %vm257, %v252
    %vm259 = vcmask 523520
    %260 = vst.msk [vmem:[#allocation2 + $0x10] sm:$0xff] %vm259, %v254
    %v261 = vrot.slane %v215, 6
    %v262 = vrot.slane %v216, 6
    %v263 = vsel %vm247, %v261, %v262
    %264 = vrot.lane.b32.xlu0 %v261, 32
    %v265 = vpop.permute.xlu0 %264
    %266 = vrot.lane.b32.xlu0 %v263, 32
    %v267 = vpop.permute.xlu0 %266
    %270 = vst.msk [vmem:[#allocation2 + $0x20] sm:$0xfc] %vm257, %v265
    %271 = vst.msk [vmem:[#allocation2 + $0x30] sm:$0xff] %vm259, %v267
    %vm272 = vcmask 1040384
    %v273 = vrot.slane %v213, 7
    %v274 = vrot.slane %v214, 7
    %v275 = vsel %vm272, %v273, %v274
    %276 = vrot.lane.b32.xlu0 %v273, 64
    %v277 = vpop.permute.xlu0 %276
    %278 = vrot.lane.b32.xlu0 %v275, 64
    %v279 = vpop.permute.xlu0 %278
    %vm282 = vcmask 785921
    %283 = vst.msk [vmem:[#allocation2] sm:$0xfe] %vm282, %v277
    %vm284 = vcmask 785920
    %285 = vst.msk [vmem:[#allocation2 + $0x10] sm:$0xff] %vm284, %v279
    %v286 = vrot.slane %v215, 7
    %v287 = vrot.slane %v216, 7
    %v288 = vsel %vm272, %v286, %v287
    %289 = vrot.lane.b32.xlu0 %v286, 64
    %v290 = vpop.permute.xlu0 %289
    %291 = vrot.lane.b32.xlu0 %v288, 64
    %v292 = vpop.permute.xlu0 %291
    %295 = vst.msk [vmem:[#allocation2 + $0x20] sm:$0xfe] %vm282, %v290
    %296 = vst.msk [vmem:[#allocation2 + $0x30] sm:$0xff] %vm284, %v292
    %297 = vrot.lane.b32.xlu0 %v213, 96
    %v298 = vpop.permute.xlu0 %297
    %299 = vrot.lane.b32.xlu0 %v214, 96
    %v300 = vpop.permute.xlu0 %299
    %vm303 = vcmask 1048320
    %304 = vst.msk [vmem:[#allocation2] sm:$0xff] %vm303, %v298
    %305 = vst.msk [vmem:[#allocation2 + $0x10] sm:$0xff] %vm303, %v300
    %306 = vrot.lane.b32.xlu0 %v215, 96
    %v307 = vpop.permute.xlu0 %306
    %308 = vrot.lane.b32.xlu0 %v216, 96
    %v309 = vpop.permute.xlu0 %308
    %312 = vst.msk [vmem:[#allocation2 + $0x20] sm:$0xff] %vm303, %v307
    %313 = vst.msk [vmem:[#allocation2 + $0x30] sm:$0xff] %vm303, %v309
    %vm314 = vcmask 1046528
    %v315 = vrot.slane %v213, 1
    %v316 = vrot.slane %v214, 1
    %v317 = vsel %vm314, %v315, %v316
    %320 = vst.msk [vmem:[#allocation2 + $0x8] sm:$0xff] %vm236, %v317
    %vm321 = vcmask 260096
    %322 = vst.msk [vmem:[#allocation2 + $0x18] sm:$0x7f] %vm321, %v316
    %v323 = vrot.slane %v215, 1
    %v324 = vrot.slane %v216, 1
    %v325 = vsel %vm314, %v323, %v324
    %328 = vst.msk [vmem:[#allocation2 + $0x28] sm:$0xff] %vm236, %v325
    %329 = vst.msk [vmem:[#allocation2 + $0x38] sm:$0x7f] %vm321, %v324
    %vm330 = vcmask 1045504
    %v331 = vrot.slane %v213, 2
    %v332 = vrot.slane %v214, 2
    %v333 = vsel %vm330, %v331, %v332
    %334 = vrot.lane.b32.xlu0 %v333, 32
    %v335 = vpop.permute.xlu0 %334
    %336 = vrot.lane.b32.xlu0 %v332, 32
    %v337 = vpop.permute.xlu0 %336
    %340 = vst.msk [vmem:[#allocation2 + $0x8] sm:$0xff] %vm259, %v335
    %vm341 = vcmask 521472
    %342 = vst.msk [vmem:[#allocation2 + $0x18] sm:$0x3f] %vm341, %v337
    %v343 = vrot.slane %v215, 2
    %v344 = vrot.slane %v216, 2
    %v345 = vsel %vm330, %v343, %v344
    %346 = vrot.lane.b32.xlu0 %v345, 32
    %v347 = vpop.permute.xlu0 %346
    %348 = vrot.lane.b32.xlu0 %v344, 32
    %v349 = vpop.permute.xlu0 %348
    %352 = vst.msk [vmem:[#allocation2 + $0x28] sm:$0xff] %vm259, %v347
    %353 = vst.msk [vmem:[#allocation2 + $0x38] sm:$0x3f] %vm341, %v349
    %vm354 = vcmask 1044480
    %v355 = vrot.slane %v213, 3
    %v356 = vrot.slane %v214, 3
    %v357 = vsel %vm354, %v355, %v356
    %358 = vrot.lane.b32.xlu0 %v357, 64
    %v359 = vpop.permute.xlu0 %358
    %360 = vrot.lane.b32.xlu0 %v356, 64
    %v361 = vpop.permute.xlu0 %360
    %364 = vst.msk [vmem:[#allocation2 + $0x8] sm:$0xff] %vm284, %v359
    %vm365 = vcmask 782848
    %366 = vst.msk [vmem:[#allocation2 + $0x18] sm:$0x1f] %vm365, %v361
    %v367 = vrot.slane %v215, 3
    %v368 = vrot.slane %v216, 3
    %v369 = vsel %vm354, %v367, %v368
    %370 = vrot.lane.b32.xlu0 %v369, 64
    %v371 = vpop.permute.xlu0 %370
    %372 = vrot.lane.b32.xlu0 %v368, 64
    %v373 = vpop.permute.xlu0 %372
    %376 = vst.msk [vmem:[#allocation2 + $0x28] sm:$0xff] %vm284, %v371
    %377 = vst.msk [vmem:[#allocation2 + $0x38] sm:$0x1f] %vm365, %v373
    %v378 = vld [vmem:[#allocation2] sm:$0xff]
    %v379 = vld [vmem:[#allocation2 + $0x8] sm:$0xff]
    %v380 = vld [vmem:[#allocation2 + $0x10] sm:$0xff]
    %v381 = vld [vmem:[#allocation2 + $0x18] sm:$0xff]
    %v382 = vld [vmem:[#allocation2 + $0x20] sm:$0xff]
    %v383 = vld [vmem:[#allocation2 + $0x28] sm:$0xff]
    %v384 = vld [vmem:[#allocation2 + $0x30] sm:$0xff]
    %v385 = vld [vmem:[#allocation2 + $0x38] sm:$0xff]
    %v386 = vld [vmem:[%s5] sm:$0xff]
    %v387 = vld [vmem:[%s5 + $0x8] sm:$0xff]
    %v388 = vld [vmem:[%s5 + $0x10] sm:$0xff]
    %v389 = vld [vmem:[%s5 + $0x18] sm:$0xff]
    %v390 = vld [vmem:[%s5 + $0x20] sm:$0xff]
    %v391 = vld [vmem:[%s5 + $0x28] sm:$0xff]
    %v392 = vld [vmem:[%s5 + $0x30] sm:$0xff]
    %v393 = vld [vmem:[%s5 + $0x38] sm:$0xff]
    %v394 = vld [vmem:[%s5 + $0x40] sm:$0xff]
    %v395 = vld [vmem:[%s5 + $0x48] sm:$0xff]
    %v396 = vld [vmem:[%s5 + $0x50] sm:$0xff]
    %v397 = vld [vmem:[%s5 + $0x58] sm:$0xff]
    %v398 = vld [vmem:[%s5 + $0x60] sm:$0xff]
    %v399 = vld [vmem:[%s5 + $0x68] sm:$0xff]
    %v400 = vld [vmem:[%s5 + $0x70] sm:$0xff]
    %v401 = vld [vmem:[%s5 + $0x78] sm:$0xff]
    %v402 = vld [vmem:[%s5 + $0x80] sm:$0xff]
    %v403 = vld [vmem:[%s5 + $0x88] sm:$0xff]
    %v404 = vld [vmem:[%s5 + $0x90] sm:$0xff]
    %v405 = vld [vmem:[%s5 + $0x98] sm:$0xff]
    %v406 = vld [vmem:[%s5 + $0xa0] sm:$0xff]
    %v407 = vld [vmem:[%s5 + $0xa8] sm:$0xff]
    %v408 = vld [vmem:[%s5 + $0xb0] sm:$0xff]
    %v409 = vld [vmem:[%s5 + $0xb8] sm:$0xff]
    %v410 = vld [vmem:[%s5 + $0xc0] sm:$0xff]
    %v411 = vld [vmem:[%s5 + $0xc8] sm:$0xff]
    %v412 = vld [vmem:[%s5 + $0xd0] sm:$0xff]
    %v413 = vld [vmem:[%s5 + $0xd8] sm:$0xff]
    %v414 = vld [vmem:[%s6] sm:$0x1]
    %v416 = vlaneseq
    %v417 = vshrl.u32 %v416, 7
    %v418 = vsub.s32 0, %v417
    %v419 = vrot.slane %v414, %v418
    %v422 = vsel %vm218, %v379, 0
    %v425 = vsel %vm218, %v381, 0
    %v428 = vsel %vm218, %v383, 0
    %v431 = vsel %vm218, %v385, 0
    %433 = vmatprep.subr.mxu0 0.0
    %434 = vmatpush1.msra.mxu0 %v386
    %435 = vmatprep.subr.mxu0 0.0
    %436 = vmatpush1.msra.mxu0 %v387
    %437 = vmatprep.subr.mxu0 0.0
    %438 = vmatpush1.msra.mxu0 %v388
    %439 = vmatprep.subr.mxu0 0.0
    %440 = vmatpush1.msra.mxu0 %v389
    %441 = vmatprep.subr.mxu0 0.0
    %442 = vmatpush1.msra.mxu0 %v390
    %443 = vmatprep.subr.mxu0 0.0
    %444 = vmatpush1.msra.mxu0 %v391
    %445 = vmatprep.subr.mxu0 0.0
    %446 = vmatpush1.msra.mxu0 %v392
    %447 = vmatprep.subr.mxu0 0.0
    %448 = vmatpush1.msra.mxu0 %v393
    %449 = vmatprep.subr.mxu0 0.0
    %450 = vmatpush1.msra.mxu0 %v394
    %451 = vmatprep.subr.mxu0 0.0
    %452 = vmatpush1.msra.mxu0 %v395
    %453 = vmatprep.subr.mxu0 0.0
    %454 = vmatpush1.msra.mxu0 %v396
    %455 = vmatprep.subr.mxu0 0.0
    %456 = vmatpush1.msra.mxu0 %v397
    %457 = vmatprep.subr.mxu0 0.0
    %458 = vmatpush1.msra.mxu0 %v398
    %459 = vmatprep.subr.mxu0 0.0
    %460 = vmatpush1.msra.mxu0 %v399
    %461 = vmatprep.subr.mxu0 0.0
    %462 = vmatpush1.msra.mxu0 %v400
    %463 = vmatprep.subr.mxu0 0.0
    %464 = vmatpush1.msra.mxu0 %v401
    %465 = vmatprep.subr.mxu0 0.0
    %466 = vmatpush1.msra.mxu0 %v402
    %467 = vmatprep.subr.mxu0 0.0
    %468 = vmatpush1.msra.mxu0 %v403
    %469 = vmatprep.subr.mxu0 0.0
    %470 = vmatpush1.msra.mxu0 %v404
    %471 = vmatprep.subr.mxu0 0.0
    %472 = vmatpush1.msra.mxu0 %v405
    %473 = vmatprep.subr.mxu0 0.0
    %474 = vmatpush1.msra.mxu0 %v406
    %475 = vmatprep.subr.mxu0 0.0
    %476 = vmatpush1.msra.mxu0 %v407
    %477 = vmatprep.subr.mxu0 0.0
    %478 = vmatpush1.msra.mxu0 %v408
    %479 = vmatprep.subr.mxu0 0.0
    %480 = vmatpush1.msra.mxu0 %v409
    %481 = vmatprep.subr.mxu0 0.0
    %482 = vmatpush1.msra.mxu0 %v410
    %483 = vmatprep.subr.mxu0 0.0
    %484 = vmatpush1.msra.mxu0 %v411
    %485 = vmatprep.subr.mxu0 0.0
    %486 = vmatpush1.msra.mxu0 %v412
    %487 = vmatprep.subr.mxu0 0.0
    %488 = vmatpush1.msra.mxu0 %v413
    %489 = vmatprep.subr.mxu0 0.0
    %490 = vmatpush1.msra.mxu0 0.0
    %491 = vmatprep.subr.mxu0 0.0
    %492 = vmatpush1.msra.mxu0 0.0
    %493 = vmatprep.subr.mxu0 0.0
    %494 = vmatpush1.msra.mxu0 0.0
    %495 = vmatprep.subr.mxu0 0.0
    %496 = vmatpush1.msra.mxu0 0.0
    %497 = vmatprep.mubr.f32.mxu0 %v422
    %498 = vmatmul.mubr.f32.gmra.mrb[0].mxu0 %v378
    %v499 = vpop.f32.mrb[0].mxu0
    %v500 = vadd.f32 %v419, %v499
    %v501 = vpop.f32.mrb[0].mxu0
    %502 = vmatprep.mubr.f32.mxu0 %v425
    %503 = vmatmul.mubr.f32.gmra.mrb[0].mxu0 %v380
    %v504 = vpop.f32.mrb[0].mxu0
    %v505 = vadd.f32 %v419, %v504
    %v506 = vpop.f32.mrb[0].mxu0
    %507 = vmatprep.mubr.f32.mxu0 %v428
    %508 = vmatmul.mubr.f32.gmra.mrb[0].mxu0 %v382
    %v509 = vpop.f32.mrb[0].mxu0
    %v510 = vadd.f32 %v419, %v509
    %v511 = vpop.f32.mrb[0].mxu0
    %512 = vmatprep.mubr.f32.mxu0 %v431
    %513 = vmatmul.mubr.f32.gmra.mrb[0].mxu0 %v384
    %v514 = vpop.f32.mrb[0].mxu0
    %v515 = vadd.f32 %v419, %v514
    %v516 = vpop.f32.mrb[0].mxu0
    %517 = vdwg.mxu0
    %v518 = vxor.u32 %v500, 2147483648
    %v519 = vxor.u32 %v505, 2147483648
    %v520 = vxor.u32 %v510, 2147483648
    %v521 = vxor.u32 %v515, 2147483648
    %v522 = vmul.f32 %v518, 1.442695
    %v523 = vpow.pop %v522
    %v524 = vmul.f32 %v519, 1.442695
    %v525 = vpow.pop %v524
    %v526 = vmul.f32 %v520, 1.442695
    %v527 = vpow.pop %v526
    %v528 = vmul.f32 %v521, 1.442695
    %v529 = vpow.pop %v528
    %v530 = vadd.f32 %v523, 1.0
    %v531 = vadd.f32 %v525, 1.0
    %v532 = vadd.f32 %v527, 1.0
    %v533 = vadd.f32 %v529, 1.0
    %v534 = vrcp.pop %v530
    %v535 = vmul.f32 1.0, %v534
    %v536 = vrcp.pop %v531
    %v537 = vmul.f32 1.0, %v536
    %v538 = vrcp.pop %v532
    %v539 = vmul.f32 1.0, %v538
    %v540 = vrcp.pop %v533
    %v541 = vmul.f32 1.0, %v540
    %v542 = vmul.f32 %v500, %v535
    %v543 = vmul.f32 %v505, %v537
    %v544 = vmul.f32 %v510, %v539
    %v545 = vmul.f32 %v515, %v541
    %546 = vst [vmem:[#allocation3] sm:$0xff] 0.0
    %547 = vst.msk [vmem:[#allocation3 + $0x8] sm:$0xff] %vm218, 0.0
    %548 = vst [vmem:[#allocation3 + $0x10] sm:$0xff] 0.0
    %549 = vst.msk [vmem:[#allocation3 + $0x18] sm:$0xff] %vm218, 0.0
    %550 = vst [vmem:[#allocation3 + $0x20] sm:$0xff] 0.0
    %551 = vst.msk [vmem:[#allocation3 + $0x28] sm:$0xff] %vm218, 0.0
    %552 = vst [vmem:[#allocation3 + $0x30] sm:$0xff] 0.0
    %553 = vst.msk [vmem:[#allocation3 + $0x38] sm:$0xff] %vm218, 0.0
    %v556 = vrot.slane %v542, 5
    %v557 = vrot.slane %v543, 5
    %v558 = vsel %vm228, %v556, %v557
    %561 = vst.msk [vmem:[#allocation3] sm:$0xf8] %vm234, %v556
    %562 = vst.msk [vmem:[#allocation3 + $0x10] sm:$0xff] %vm236, %v558
    %v565 = vrot.slane %v544, 5
    %v566 = vrot.slane %v545, 5
    %v567 = vsel %vm228, %v565, %v566
    %570 = vst.msk [vmem:[#allocation3 + $0x20] sm:$0xf8] %vm234, %v565
    %571 = vst.msk [vmem:[#allocation3 + $0x30] sm:$0xff] %vm236, %v567
    %v572 = vrot.slane %v542, 6
    %v573 = vrot.slane %v543, 6
    %v574 = vsel %vm247, %v572, %v573
    %575 = vrot.lane.b32.xlu0 %v572, 32
    %v576 = vpop.permute.xlu0 %575
    %577 = vrot.lane.b32.xlu0 %v574, 32
    %v578 = vpop.permute.xlu0 %577
    %581 = vst.msk [vmem:[#allocation3] sm:$0xfc] %vm257, %v576
    %582 = vst.msk [vmem:[#allocation3 + $0x10] sm:$0xff] %vm259, %v578
    %v583 = vrot.slane %v544, 6
    %v584 = vrot.slane %v545, 6
    %v585 = vsel %vm247, %v583, %v584
    %586 = vrot.lane.b32.xlu0 %v583, 32
    %v587 = vpop.permute.xlu0 %586
    %588 = vrot.lane.b32.xlu0 %v585, 32
    %v589 = vpop.permute.xlu0 %588
    %592 = vst.msk [vmem:[#allocation3 + $0x20] sm:$0xfc] %vm257, %v587
    %593 = vst.msk [vmem:[#allocation3 + $0x30] sm:$0xff] %vm259, %v589
    %v594 = vrot.slane %v542, 7
    %v595 = vrot.slane %v543, 7
    %v596 = vsel %vm272, %v594, %v595
    %597 = vrot.lane.b32.xlu0 %v594, 64
    %v598 = vpop.permute.xlu0 %597
    %599 = vrot.lane.b32.xlu0 %v596, 64
    %v600 = vpop.permute.xlu0 %599
    %603 = vst.msk [vmem:[#allocation3] sm:$0xfe] %vm282, %v598
    %604 = vst.msk [vmem:[#allocation3 + $0x10] sm:$0xff] %vm284, %v600
    %v605 = vrot.slane %v544, 7
    %v606 = vrot.slane %v545, 7
    %v607 = vsel %vm272, %v605, %v606
    %608 = vrot.lane.b32.xlu0 %v605, 64
    %v609 = vpop.permute.xlu0 %608
    %610 = vrot.lane.b32.xlu0 %v607, 64
    %v611 = vpop.permute.xlu0 %610
    %614 = vst.msk [vmem:[#allocation3 + $0x20] sm:$0xfe] %vm282, %v609
    %615 = vst.msk [vmem:[#allocation3 + $0x30] sm:$0xff] %vm284, %v611
    %616 = vrot.lane.b32.xlu0 %v542, 96
    %v617 = vpop.permute.xlu0 %616
    %618 = vrot.lane.b32.xlu0 %v543, 96
    %v619 = vpop.permute.xlu0 %618
    %622 = vst.msk [vmem:[#allocation3] sm:$0xff] %vm303, %v617
    %623 = vst.msk [vmem:[#allocation3 + $0x10] sm:$0xff] %vm303, %v619
    %624 = vrot.lane.b32.xlu0 %v544, 96
    %v625 = vpop.permute.xlu0 %624
    %626 = vrot.lane.b32.xlu0 %v545, 96
    %v627 = vpop.permute.xlu0 %626
    %630 = vst.msk [vmem:[#allocation3 + $0x20] sm:$0xff] %vm303, %v625
    %631 = vst.msk [vmem:[#allocation3 + $0x30] sm:$0xff] %vm303, %v627
    %v632 = vrot.slane %v542, 1
    %v633 = vrot.slane %v543, 1
    %v634 = vsel %vm314, %v632, %v633
    %637 = vst.msk [vmem:[#allocation3 + $0x8] sm:$0xff] %vm236, %v634
    %638 = vst.msk [vmem:[#allocation3 + $0x18] sm:$0x7f] %vm321, %v633
    %v639 = vrot.slane %v544, 1
    %v640 = vrot.slane %v545, 1
    %v641 = vsel %vm314, %v639, %v640
    %644 = vst.msk [vmem:[#allocation3 + $0x28] sm:$0xff] %vm236, %v641
    %645 = vst.msk [vmem:[#allocation3 + $0x38] sm:$0x7f] %vm321, %v640
    %v646 = vrot.slane %v542, 2
    %v647 = vrot.slane %v543, 2
    %v648 = vsel %vm330, %v646, %v647
    %649 = vrot.lane.b32.xlu0 %v648, 32
    %v650 = vpop.permute.xlu0 %649
    %651 = vrot.lane.b32.xlu0 %v647, 32
    %v652 = vpop.permute.xlu0 %651
    %655 = vst.msk [vmem:[#allocation3 + $0x8] sm:$0xff] %vm259, %v650
    %656 = vst.msk [vmem:[#allocation3 + $0x18] sm:$0x3f] %vm341, %v652
    %v657 = vrot.slane %v544, 2
    %v658 = vrot.slane %v545, 2
    %v659 = vsel %vm330, %v657, %v658
    %660 = vrot.lane.b32.xlu0 %v659, 32
    %v661 = vpop.permute.xlu0 %660
    %662 = vrot.lane.b32.xlu0 %v658, 32
    %v663 = vpop.permute.xlu0 %662
    %666 = vst.msk [vmem:[#allocation3 + $0x28] sm:$0xff] %vm259, %v661
    %667 = vst.msk [vmem:[#allocation3 + $0x38] sm:$0x3f] %vm341, %v663
    %v668 = vrot.slane %v542, 3
    %v669 = vrot.slane %v543, 3
    %v670 = vsel %vm354, %v668, %v669
    %671 = vrot.lane.b32.xlu0 %v670, 64
    %v672 = vpop.permute.xlu0 %671
    %673 = vrot.lane.b32.xlu0 %v669, 64
    %v674 = vpop.permute.xlu0 %673
    %677 = vst.msk [vmem:[#allocation3 + $0x8] sm:$0xff] %vm284, %v672
    %678 = vst.msk [vmem:[#allocation3 + $0x18] sm:$0x1f] %vm365, %v674
    %v679 = vrot.slane %v544, 3
    %v680 = vrot.slane %v545, 3
    %v681 = vsel %vm354, %v679, %v680
    %682 = vrot.lane.b32.xlu0 %v681, 64
    %v683 = vpop.permute.xlu0 %682
    %684 = vrot.lane.b32.xlu0 %v680, 64
    %v685 = vpop.permute.xlu0 %684
    %688 = vst.msk [vmem:[#allocation3 + $0x28] sm:$0xff] %vm284, %v683
    %689 = vst.msk [vmem:[#allocation3 + $0x38] sm:$0x1f] %vm365, %v685
    %v690 = vld [vmem:[#allocation3] sm:$0xff]
    %v691 = vld [vmem:[#allocation3 + $0x8] sm:$0xff]
    %v692 = vld [vmem:[#allocation3 + $0x10] sm:$0xff]
    %v693 = vld [vmem:[#allocation3 + $0x18] sm:$0xff]
    %v694 = vld [vmem:[#allocation3 + $0x20] sm:$0xff]
    %v695 = vld [vmem:[#allocation3 + $0x28] sm:$0xff]
    %v696 = vld [vmem:[#allocation3 + $0x30] sm:$0xff]
    %v697 = vld [vmem:[#allocation3 + $0x38] sm:$0xff]
    %v698 = vld [vmem:[%s7] sm:$0xff]
    %v699 = vld [vmem:[%s7 + $0x8] sm:$0xff]
    %v700 = vld [vmem:[%s7 + $0x10] sm:$0xff]
    %v701 = vld [vmem:[%s7 + $0x18] sm:$0xff]
    %v702 = vld [vmem:[%s7 + $0x20] sm:$0xff]
    %v703 = vld [vmem:[%s7 + $0x28] sm:$0xff]
    %v704 = vld [vmem:[%s7 + $0x30] sm:$0xff]
    %v705 = vld [vmem:[%s7 + $0x38] sm:$0xff]
    %v706 = vld [vmem:[%s7 + $0x40] sm:$0xff]
    %v707 = vld [vmem:[%s7 + $0x48] sm:$0xff]
    %v708 = vld [vmem:[%s7 + $0x50] sm:$0xff]
    %v709 = vld [vmem:[%s7 + $0x58] sm:$0xff]
    %v710 = vld [vmem:[%s7 + $0x60] sm:$0xff]
    %v711 = vld [vmem:[%s7 + $0x68] sm:$0xff]
    %v712 = vld [vmem:[%s7 + $0x70] sm:$0xff]
    %v713 = vld [vmem:[%s7 + $0x78] sm:$0xff]
    %v714 = vld [vmem:[%s7 + $0x80] sm:$0xff]
    %v715 = vld [vmem:[%s7 + $0x88] sm:$0xff]
    %v716 = vld [vmem:[%s7 + $0x90] sm:$0xff]
    %v717 = vld [vmem:[%s7 + $0x98] sm:$0xff]
    %v718 = vld [vmem:[%s7 + $0xa0] sm:$0xff]
    %v719 = vld [vmem:[%s7 + $0xa8] sm:$0xff]
    %v720 = vld [vmem:[%s7 + $0xb0] sm:$0xff]
    %v721 = vld [vmem:[%s7 + $0xb8] sm:$0xff]
    %v722 = vld [vmem:[%s7 + $0xc0] sm:$0xff]
    %v723 = vld [vmem:[%s7 + $0xc8] sm:$0xff]
    %v724 = vld [vmem:[%s7 + $0xd0] sm:$0xff]
    %v725 = vld [vmem:[%s7 + $0xd8] sm:$0xff]
    %v726 = vld [vmem:[%s8] sm:$0x1]
    %v728 = vlaneseq
    %v729 = vshrl.u32 %v728, 7
    %v730 = vsub.s32 0, %v729
    %v731 = vrot.slane %v726, %v730
    %v734 = vsel %vm218, %v691, 0
    %v737 = vsel %vm218, %v693, 0
    %v740 = vsel %vm218, %v695, 0
    %v743 = vsel %vm218, %v697, 0
    %745 = vmatprep.subr.mxu0 0.0
    %746 = vmatpush1.msra.mxu0 %v698
    %747 = vmatprep.subr.mxu0 0.0
    %748 = vmatpush1.msra.mxu0 %v699
    %749 = vmatprep.subr.mxu0 0.0
    %750 = vmatpush1.msra.mxu0 %v700
    %751 = vmatprep.subr.mxu0 0.0
    %752 = vmatpush1.msra.mxu0 %v701
    %753 = vmatprep.subr.mxu0 0.0
    %754 = vmatpush1.msra.mxu0 %v702
    %755 = vmatprep.subr.mxu0 0.0
    %756 = vmatpush1.msra.mxu0 %v703
    %757 = vmatprep.subr.mxu0 0.0
    %758 = vmatpush1.msra.mxu0 %v704
    %759 = vmatprep.subr.mxu0 0.0
    %760 = vmatpush1.msra.mxu0 %v705
    %761 = vmatprep.subr.mxu0 0.0
    %762 = vmatpush1.msra.mxu0 %v706
    %763 = vmatprep.subr.mxu0 0.0
    %764 = vmatpush1.msra.mxu0 %v707
    %765 = vmatprep.subr.mxu0 0.0
    %766 = vmatpush1.msra.mxu0 %v708
    %767 = vmatprep.subr.mxu0 0.0
    %768 = vmatpush1.msra.mxu0 %v709
    %769 = vmatprep.subr.mxu0 0.0
    %770 = vmatpush1.msra.mxu0 %v710
    %771 = vmatprep.subr.mxu0 0.0
    %772 = vmatpush1.msra.mxu0 %v711
    %773 = vmatprep.subr.mxu0 0.0
    %774 = vmatpush1.msra.mxu0 %v712
    %775 = vmatprep.subr.mxu0 0.0
    %776 = vmatpush1.msra.mxu0 %v713
    %777 = vmatprep.subr.mxu0 0.0
    %778 = vmatpush1.msra.mxu0 %v714
    %779 = vmatprep.subr.mxu0 0.0
    %780 = vmatpush1.msra.mxu0 %v715
    %781 = vmatprep.subr.mxu0 0.0
    %782 = vmatpush1.msra.mxu0 %v716
    %783 = vmatprep.subr.mxu0 0.0
    %784 = vmatpush1.msra.mxu0 %v717
    %785 = vmatprep.subr.mxu0 0.0
    %786 = vmatpush1.msra.mxu0 %v718
    %787 = vmatprep.subr.mxu0 0.0
    %788 = vmatpush1.msra.mxu0 %v719
    %789 = vmatprep.subr.mxu0 0.0
    %790 = vmatpush1.msra.mxu0 %v720
    %791 = vmatprep.subr.mxu0 0.0
    %792 = vmatpush1.msra.mxu0 %v721
    %793 = vmatprep.subr.mxu0 0.0
    %794 = vmatpush1.msra.mxu0 %v722
    %795 = vmatprep.subr.mxu0 0.0
    %796 = vmatpush1.msra.mxu0 %v723
    %797 = vmatprep.subr.mxu0 0.0
    %798 = vmatpush1.msra.mxu0 %v724
    %799 = vmatprep.subr.mxu0 0.0
    %800 = vmatpush1.msra.mxu0 %v725
    %801 = vmatprep.subr.mxu0 0.0
    %802 = vmatpush1.msra.mxu0 0.0
    %803 = vmatprep.subr.mxu0 0.0
    %804 = vmatpush1.msra.mxu0 0.0
    %805 = vmatprep.subr.mxu0 0.0
    %806 = vmatpush1.msra.mxu0 0.0
    %807 = vmatprep.subr.mxu0 0.0
    %808 = vmatpush1.msra.mxu0 0.0
    %809 = vmatprep.mubr.f32.mxu0 %v734
    %810 = vmatmul.mubr.f32.gmra.mrb[0].mxu0 %v690
    %v811 = vpop.f32.mrb[0].mxu0
    %v812 = vadd.f32 %v731, %v811
    %v813 = vpop.f32.mrb[0].mxu0
    %814 = vmatprep.mubr.f32.mxu0 %v737
    %815 = vmatmul.mubr.f32.gmra.mrb[0].mxu0 %v692
    %v816 = vpop.f32.mrb[0].mxu0
    %v817 = vadd.f32 %v731, %v816
    %v818 = vpop.f32.mrb[0].mxu0
    %819 = vmatprep.mubr.f32.mxu0 %v740
    %820 = vmatmul.mubr.f32.gmra.mrb[0].mxu0 %v694
    %v821 = vpop.f32.mrb[0].mxu0
    %v822 = vadd.f32 %v731, %v821
    %v823 = vpop.f32.mrb[0].mxu0
    %824 = vmatprep.mubr.f32.mxu0 %v743
    %825 = vmatmul.mubr.f32.gmra.mrb[0].mxu0 %v696
    %v826 = vpop.f32.mrb[0].mxu0
    %v827 = vadd.f32 %v731, %v826
    %v828 = vpop.f32.mrb[0].mxu0
    %829 = vdwg.mxu0
    %v830 = vxor.u32 %v812, 2147483648
    %v831 = vxor.u32 %v817, 2147483648
    %v832 = vxor.u32 %v822, 2147483648
    %v833 = vxor.u32 %v827, 2147483648
    %v834 = vmul.f32 %v830, 1.442695
    %v835 = vpow.pop %v834
    %v836 = vmul.f32 %v831, 1.442695
    %v837 = vpow.pop %v836
    %v838 = vmul.f32 %v832, 1.442695
    %v839 = vpow.pop %v838
    %v840 = vmul.f32 %v833, 1.442695
    %v841 = vpow.pop %v840
    %v842 = vadd.f32 %v835, 1.0
    %v843 = vadd.f32 %v837, 1.0
    %v844 = vadd.f32 %v839, 1.0
    %v845 = vadd.f32 %v841, 1.0
    %v846 = vrcp.pop %v842
    %v847 = vmul.f32 1.0, %v846
    %v848 = vrcp.pop %v843
    %v849 = vmul.f32 1.0, %v848
    %v850 = vrcp.pop %v844
    %v851 = vmul.f32 1.0, %v850
    %v852 = vrcp.pop %v845
    %v853 = vmul.f32 1.0, %v852
    %v854 = vmul.f32 %v812, %v847
    %v855 = vmul.f32 %v817, %v849
    %v856 = vmul.f32 %v822, %v851
    %v857 = vmul.f32 %v827, %v853
    %858 = vst [vmem:[#allocation4] sm:$0xff] 0.0
    %859 = vst [vmem:[#allocation4 + $0x8] sm:$0xff] 0.0
    %860 = vst [vmem:[#allocation4 + $0x10] sm:$0xff] 0.0
    %vm861 = vcmask 523264
    %862 = vst.msk [vmem:[#allocation4 + $0x18] sm:$0xff] %vm861, 0.0
    %863 = vst [vmem:[#allocation4 + $0x20] sm:$0xff] 0.0
    %864 = vst [vmem:[#allocation4 + $0x28] sm:$0xff] 0.0
    %865 = vst [vmem:[#allocation4 + $0x30] sm:$0xff] 0.0
    %866 = vst.msk [vmem:[#allocation4 + $0x38] sm:$0xff] %vm861, 0.0
    %867 = vst [vmem:[#allocation4 + $0x40] sm:$0xff] 0.0
    %868 = vst [vmem:[#allocation4 + $0x48] sm:$0xff] 0.0
    %869 = vst [vmem:[#allocation4 + $0x50] sm:$0xff] 0.0
    %870 = vst.msk [vmem:[#allocation4 + $0x58] sm:$0xff] %vm861, 0.0
    %871 = vst [vmem:[#allocation4 + $0x60] sm:$0xff] 0.0
    %872 = vst [vmem:[#allocation4 + $0x68] sm:$0xff] 0.0
    %873 = vst [vmem:[#allocation4 + $0x70] sm:$0xff] 0.0
    %874 = vst.msk [vmem:[#allocation4 + $0x78] sm:$0xff] %vm861, 0.0
    %v877 = vrot.slane %v854, 5
    %v878 = vrot.slane %v855, 5
    %v879 = vsel %vm228, %v877, %v878
    %vm882 = vcmask 523267
    %883 = vst.msk [vmem:[#allocation4] sm:$0xf8] %vm882, %v877
    %884 = vst.msk [vmem:[#allocation4 + $0x20] sm:$0xff] %vm861, %v879
    %v887 = vrot.slane %v856, 5
    %v888 = vrot.slane %v857, 5
    %v889 = vsel %vm228, %v887, %v888
    %892 = vst.msk [vmem:[#allocation4 + $0x40] sm:$0xf8] %vm882, %v887
    %893 = vst.msk [vmem:[#allocation4 + $0x60] sm:$0xff] %vm861, %v889
    %v894 = vrot.slane %v854, 6
    %v895 = vrot.slane %v855, 6
    %v896 = vsel %vm247, %v894, %v895
    %897 = vrot.lane.b32.xlu0 %v894, 64
    %v898 = vpop.permute.xlu0 %897
    %899 = vrot.lane.b32.xlu0 %v896, 64
    %v900 = vpop.permute.xlu0 %899
    %vm903 = vcmask 1048066
    %904 = vst.msk [vmem:[#allocation4] sm:$0xfc] %vm903, %v898
    %vm905 = vcmask 1048064
    %906 = vst.msk [vmem:[#allocation4 + $0x20] sm:$0xff] %vm905, %v900
    %v907 = vrot.slane %v856, 6
    %v908 = vrot.slane %v857, 6
    %v909 = vsel %vm247, %v907, %v908
    %910 = vrot.lane.b32.xlu0 %v907, 64
    %v911 = vpop.permute.xlu0 %910
    %912 = vrot.lane.b32.xlu0 %v909, 64
    %v913 = vpop.permute.xlu0 %912
    %916 = vst.msk [vmem:[#allocation4 + $0x40] sm:$0xfc] %vm903, %v911
    %917 = vst.msk [vmem:[#allocation4 + $0x60] sm:$0xff] %vm905, %v913
    %v918 = vrot.slane %v854, 7
    %v919 = vrot.slane %v855, 7
    %v920 = vsel %vm272, %v918, %v919
    %vm923 = vcmask 523265
    %924 = vst.msk [vmem:[#allocation4 + $0x8] sm:$0xfe] %vm923, %v918
    %925 = vst.msk [vmem:[#allocation4 + $0x28] sm:$0xff] %vm861, %v920
    %v926 = vrot.slane %v856, 7
    %v927 = vrot.slane %v857, 7
    %v928 = vsel %vm272, %v926, %v927
    %931 = vst.msk [vmem:[#allocation4 + $0x48] sm:$0xfe] %vm923, %v926
    %932 = vst.msk [vmem:[#allocation4 + $0x68] sm:$0xff] %vm861, %v928
    %933 = vrot.lane.b32.xlu0 %v854, 64
    %v934 = vpop.permute.xlu0 %933
    %935 = vrot.lane.b32.xlu0 %v855, 64
    %v936 = vpop.permute.xlu0 %935
    %939 = vst.msk [vmem:[#allocation4 + $0x8] sm:$0xff] %vm905, %v934
    %940 = vst.msk [vmem:[#allocation4 + $0x28] sm:$0xff] %vm905, %v936
    %941 = vrot.lane.b32.xlu0 %v856, 64
    %v942 = vpop.permute.xlu0 %941
    %943 = vrot.lane.b32.xlu0 %v857, 64
    %v944 = vpop.permute.xlu0 %943
    %947 = vst.msk [vmem:[#allocation4 + $0x48] sm:$0xff] %vm905, %v942
    %948 = vst.msk [vmem:[#allocation4 + $0x68] sm:$0xff] %vm905, %v944
    %v949 = vrot.slane %v854, 1
    %v950 = vrot.slane %v855, 1
    %v951 = vsel %vm314, %v949, %v950
    %954 = vst.msk [vmem:[#allocation4 + $0x10] sm:$0xff] %vm861, %v951
    %vm955 = vcmask 522240
    %956 = vst.msk [vmem:[#allocation4 + $0x30] sm:$0x7f] %vm955, %v950
    %v957 = vrot.slane %v856, 1
    %v958 = vrot.slane %v857, 1
    %v959 = vsel %vm314, %v957, %v958
    %962 = vst.msk [vmem:[#allocation4 + $0x50] sm:$0xff] %vm861, %v959
    %963 = vst.msk [vmem:[#allocation4 + $0x70] sm:$0x7f] %vm955, %v958
    %v964 = vrot.slane %v854, 2
    %v965 = vrot.slane %v855, 2
    %v966 = vsel %vm330, %v964, %v965
    %967 = vrot.lane.b32.xlu0 %v966, 64
    %v968 = vpop.permute.xlu0 %967
    %969 = vrot.lane.b32.xlu0 %v965, 64
    %v970 = vpop.permute.xlu0 %969
    %973 = vst.msk [vmem:[#allocation4 + $0x10] sm:$0xff] %vm905, %v968
    %vm974 = vcmask 1046016
    %975 = vst.msk [vmem:[#allocation4 + $0x30] sm:$0x3f] %vm974, %v970
    %v976 = vrot.slane %v856, 2
    %v977 = vrot.slane %v857, 2
    %v978 = vsel %vm330, %v976, %v977
    %979 = vrot.lane.b32.xlu0 %v978, 64
    %v980 = vpop.permute.xlu0 %979
    %981 = vrot.lane.b32.xlu0 %v977, 64
    %v982 = vpop.permute.xlu0 %981
    %985 = vst.msk [vmem:[#allocation4 + $0x50] sm:$0xff] %vm905, %v980
    %986 = vst.msk [vmem:[#allocation4 + $0x70] sm:$0x3f] %vm974, %v982
    %v987 = vrot.slane %v854, 3
    %v988 = vrot.slane %v855, 3
    %v989 = vsel %vm354, %v987, %v988
    %992 = vst.msk [vmem:[#allocation4 + $0x18] sm:$0xff] %vm861, %v989
    %vm993 = vcmask 520192
    %994 = vst.msk [vmem:[#allocation4 + $0x38] sm:$0x1f] %vm993, %v988
    %v995 = vrot.slane %v856, 3
    %v996 = vrot.slane %v857, 3
    %v997 = vsel %vm354, %v995, %v996
    %1000 = vst.msk [vmem:[#allocation4 + $0x58] sm:$0xff] %vm861, %v997
    %1001 = vst.msk [vmem:[#allocation4 + $0x78] sm:$0x1f] %vm993, %v996
    %v1002 = vld [vmem:[#allocation4] sm:$0xff]
    %v1003 = vld [vmem:[#allocation4 + $0x8] sm:$0xff]
    %v1004 = vld [vmem:[#allocation4 + $0x10] sm:$0xff]
    %v1005 = vld [vmem:[#allocation4 + $0x18] sm:$0xff]
    %v1006 = vld [vmem:[#allocation4 + $0x20] sm:$0xff]
    %v1007 = vld [vmem:[#allocation4 + $0x28] sm:$0xff]
    %v1008 = vld [vmem:[#allocation4 + $0x30] sm:$0xff]
    %v1009 = vld [vmem:[#allocation4 + $0x38] sm:$0xff]
    %v1010 = vld [vmem:[#allocation4 + $0x40] sm:$0xff]
    %v1011 = vld [vmem:[#allocation4 + $0x48] sm:$0xff]
    %v1012 = vld [vmem:[#allocation4 + $0x50] sm:$0xff]
    %v1013 = vld [vmem:[#allocation4 + $0x58] sm:$0xff]
    %v1014 = vld [vmem:[#allocation4 + $0x60] sm:$0xff]
    %v1015 = vld [vmem:[#allocation4 + $0x68] sm:$0xff]
    %v1016 = vld [vmem:[#allocation4 + $0x70] sm:$0xff]
    %v1017 = vld [vmem:[#allocation4 + $0x78] sm:$0xff]
    %v1018 = vld [vmem:[%s9] sm:$0xff]
    %v1019 = vld [vmem:[%s9 + $0x8] sm:$0xff]
    %v1020 = vld [vmem:[%s9 + $0x10] sm:$0xff]
    %v1021 = vld [vmem:[%s9 + $0x18] sm:$0xff]
    %v1022 = vld [vmem:[%s9 + $0x20] sm:$0xff]
    %v1023 = vld [vmem:[%s9 + $0x28] sm:$0xff]
    %v1024 = vld [vmem:[%s9 + $0x30] sm:$0xff]
    %v1025 = vld [vmem:[%s9 + $0x38] sm:$0xff]
    %v1026 = vld [vmem:[%s9 + $0x40] sm:$0xff]
    %v1027 = vld [vmem:[%s9 + $0x48] sm:$0xff]
    %v1028 = vld [vmem:[%s9 + $0x50] sm:$0xff]
    %v1029 = vld [vmem:[%s9 + $0x58] sm:$0xff]
    %v1030 = vld [vmem:[%s9 + $0x60] sm:$0xff]
    %v1031 = vld [vmem:[%s9 + $0x68] sm:$0xff]
    %v1032 = vld [vmem:[%s9 + $0x70] sm:$0xff]
    %v1033 = vld [vmem:[%s9 + $0x78] sm:$0xff]
    %v1034 = vld [vmem:[%s9 + $0x80] sm:$0xff]
    %v1035 = vld [vmem:[%s9 + $0x88] sm:$0xff]
    %v1036 = vld [vmem:[%s9 + $0x90] sm:$0xff]
    %v1037 = vld [vmem:[%s9 + $0x98] sm:$0xff]
    %v1038 = vld [vmem:[%s9 + $0xa0] sm:$0xff]
    %v1039 = vld [vmem:[%s9 + $0xa8] sm:$0xff]
    %v1040 = vld [vmem:[%s9 + $0xb0] sm:$0xff]
    %v1041 = vld [vmem:[%s9 + $0xb8] sm:$0xff]
    %v1042 = vld [vmem:[%s9 + $0xc0] sm:$0xff]
    %v1043 = vld [vmem:[%s9 + $0xc8] sm:$0xff]
    %v1044 = vld [vmem:[%s9 + $0xd0] sm:$0xff]
    %v1045 = vld [vmem:[%s9 + $0xd8] sm:$0xff]
    %v1046 = vld [vmem:[%s9 + $0xe0] sm:$0xff]
    %v1047 = vld [vmem:[%s9 + $0xe8] sm:$0xff]
    %v1048 = vld [vmem:[%s9 + $0xf0] sm:$0xff]
    %v1049 = vld [vmem:[%s9 + $0xf8] sm:$0xff]
    %v1050 = vld [vmem:[%s9 + $0x100] sm:$0xff]
    %v1051 = vld [vmem:[%s9 + $0x108] sm:$0xff]
    %v1052 = vld [vmem:[%s9 + $0x110] sm:$0xff]
    %v1053 = vld [vmem:[%s9 + $0x118] sm:$0xff]
    %v1054 = vld [vmem:[%s9 + $0x120] sm:$0xff]
    %v1055 = vld [vmem:[%s9 + $0x128] sm:$0xff]
    %v1056 = vld [vmem:[%s9 + $0x130] sm:$0xff]
    %v1057 = vld [vmem:[%s9 + $0x138] sm:$0xff]
    %v1058 = vld [vmem:[%s9 + $0x140] sm:$0xff]
    %v1059 = vld [vmem:[%s9 + $0x148] sm:$0xff]
    %v1060 = vld [vmem:[%s9 + $0x150] sm:$0xff]
    %v1061 = vld [vmem:[%s9 + $0x158] sm:$0xff]
    %v1062 = vld [vmem:[%s9 + $0x160] sm:$0xff]
    %v1063 = vld [vmem:[%s9 + $0x168] sm:$0xff]
    %v1064 = vld [vmem:[%s9 + $0x170] sm:$0xff]
    %v1065 = vld [vmem:[%s9 + $0x178] sm:$0xff]
    %v1066 = vld [vmem:[%s9 + $0x180] sm:$0xff]
    %v1067 = vld [vmem:[%s9 + $0x188] sm:$0xff]
    %v1068 = vld [vmem:[%s9 + $0x190] sm:$0xff]
    %v1069 = vld [vmem:[%s9 + $0x198] sm:$0xff]
    %v1070 = vld [vmem:[%s9 + $0x1a0] sm:$0xff]
    %v1071 = vld [vmem:[%s9 + $0x1a8] sm:$0xff]
    %v1072 = vld [vmem:[%s9 + $0x1b0] sm:$0xff]
    %v1073 = vld [vmem:[%s9 + $0x1b8] sm:$0xff]
    %v1074 = vld [vmem:[%s10] sm:$0x1]
    %v1076 = vlaneseq
    %v1077 = vshrl.u32 %v1076, 7
    %v1078 = vsub.s32 0, %v1077
    %v1079 = vrot.slane %v1074, %v1078
    %v1082 = vsel %vm861, %v1005, 0
    %v1085 = vsel %vm861, %v1009, 0
    %v1088 = vsel %vm861, %v1013, 0
    %v1091 = vsel %vm861, %v1017, 0
    %1093 = vmatprep.subr.mxu0 0.0
    %1094 = vmatpush1.msra.mxu0 %v1018
    %1095 = vmatprep.subr.mxu0 0.0
    %1096 = vmatpush1.msra.mxu0 %v1019
    %1097 = vmatprep.subr.mxu0 0.0
    %1098 = vmatpush1.msra.mxu0 %v1020
    %1099 = vmatprep.subr.mxu0 0.0
    %1100 = vmatpush1.msra.mxu0 %v1021
    %1101 = vmatprep.subr.mxu0 0.0
    %1102 = vmatpush1.msra.mxu0 %v1022
    %1103 = vmatprep.subr.mxu0 0.0
    %1104 = vmatpush1.msra.mxu0 %v1023
    %1105 = vmatprep.subr.mxu0 0.0
    %1106 = vmatpush1.msra.mxu0 %v1024
    %1107 = vmatprep.subr.mxu0 0.0
    %1108 = vmatpush1.msra.mxu0 %v1025
    %1109 = vmatprep.subr.mxu0 0.0
    %1110 = vmatpush1.msra.mxu0 %v1026
    %1111 = vmatprep.subr.mxu0 0.0
    %1112 = vmatpush1.msra.mxu0 %v1027
    %1113 = vmatprep.subr.mxu0 0.0
    %1114 = vmatpush1.msra.mxu0 %v1028
    %1115 = vmatprep.subr.mxu0 0.0
    %1116 = vmatpush1.msra.mxu0 %v1029
    %1117 = vmatprep.subr.mxu0 0.0
    %1118 = vmatpush1.msra.mxu0 %v1030
    %1119 = vmatprep.subr.mxu0 0.0
    %1120 = vmatpush1.msra.mxu0 %v1031
    %1121 = vmatprep.subr.mxu0 0.0
    %1122 = vmatpush1.msra.mxu0 %v1032
    %1123 = vmatprep.subr.mxu0 0.0
    %1124 = vmatpush1.msra.mxu0 %v1033
    %1125 = vmatprep.subr.mxu0 0.0
    %1126 = vmatpush1.msra.mxu0 %v1034
    %1127 = vmatprep.subr.mxu0 0.0
    %1128 = vmatpush1.msra.mxu0 %v1035
    %1129 = vmatprep.subr.mxu0 0.0
    %1130 = vmatpush1.msra.mxu0 %v1036
    %1131 = vmatprep.subr.mxu0 0.0
    %1132 = vmatpush1.msra.mxu0 %v1037
    %1133 = vmatprep.subr.mxu0 0.0
    %1134 = vmatpush1.msra.mxu0 %v1038
    %1135 = vmatprep.subr.mxu0 0.0
    %1136 = vmatpush1.msra.mxu0 %v1039
    %1137 = vmatprep.subr.mxu0 0.0
    %1138 = vmatpush1.msra.mxu0 %v1040
    %1139 = vmatprep.subr.mxu0 0.0
    %1140 = vmatpush1.msra.mxu0 %v1041
    %1141 = vmatprep.subr.mxu0 0.0
    %1142 = vmatpush1.msra.mxu0 %v1042
    %1143 = vmatprep.subr.mxu0 0.0
    %1144 = vmatpush1.msra.mxu0 %v1043
    %1145 = vmatprep.subr.mxu0 0.0
    %1146 = vmatpush1.msra.mxu0 %v1044
    %1147 = vmatprep.subr.mxu0 0.0
    %1148 = vmatpush1.msra.mxu0 %v1045
    %1149 = vmatprep.subr.mxu0 0.0
    %1150 = vmatpush1.msra.mxu0 %v1046
    %1151 = vmatprep.subr.mxu0 0.0
    %1152 = vmatpush1.msra.mxu0 %v1047
    %1153 = vmatprep.subr.mxu0 0.0
    %1154 = vmatpush1.msra.mxu0 %v1048
    %1155 = vmatprep.subr.mxu0 0.0
    %1156 = vmatpush1.msra.mxu0 %v1049
    %1157 = vmatprep.mubr.f32.mxu0 %v1003
    %1158 = vmatmul.mubr.f32.gmra.mrb[0].mxu0 %v1002
    %v1159 = vpop.f32.mrb[0].mxu0
    %v1160 = vadd.f32 %v1079, %v1159
    %v1161 = vpop.f32.mrb[0].mxu0
    %1162 = vmatprep.mubr.f32.mxu0 %v1007
    %1163 = vmatmul.mubr.f32.gmra.mrb[0].mxu0 %v1006
    %v1164 = vpop.f32.mrb[0].mxu0
    %v1165 = vadd.f32 %v1079, %v1164
    %v1166 = vpop.f32.mrb[0].mxu0
    %1167 = vmatprep.mubr.f32.mxu0 %v1011
    %1168 = vmatmul.mubr.f32.gmra.mrb[0].mxu0 %v1010
    %v1169 = vpop.f32.mrb[0].mxu0
    %v1170 = vadd.f32 %v1079, %v1169
    %v1171 = vpop.f32.mrb[0].mxu0
    %1172 = vmatprep.mubr.f32.mxu0 %v1015
    %1173 = vmatmul.mubr.f32.gmra.mrb[0].mxu0 %v1014
    %v1174 = vpop.f32.mrb[0].mxu0
    %v1175 = vadd.f32 %v1079, %v1174
    %v1176 = vpop.f32.mrb[0].mxu0
    %1177 = vdwg.mxu0
    %1178 = vmatprep.subr.mxu0 0.0
    %1179 = vmatpush1.msra.mxu0 %v1050
    %1180 = vmatprep.subr.mxu0 0.0
    %1181 = vmatpush1.msra.mxu0 %v1051
    %1182 = vmatprep.subr.mxu0 0.0
    %1183 = vmatpush1.msra.mxu0 %v1052
    %1184 = vmatprep.subr.mxu0 0.0
    %1185 = vmatpush1.msra.mxu0 %v1053
    %1186 = vmatprep.subr.mxu0 0.0
    %1187 = vmatpush1.msra.mxu0 %v1054
    %1188 = vmatprep.subr.mxu0 0.0
    %1189 = vmatpush1.msra.mxu0 %v1055
    %1190 = vmatprep.subr.mxu0 0.0
    %1191 = vmatpush1.msra.mxu0 %v1056
    %1192 = vmatprep.subr.mxu0 0.0
    %1193 = vmatpush1.msra.mxu0 %v1057
    %1194 = vmatprep.subr.mxu0 0.0
    %1195 = vmatpush1.msra.mxu0 %v1058
    %1196 = vmatprep.subr.mxu0 0.0
    %1197 = vmatpush1.msra.mxu0 %v1059
    %1198 = vmatprep.subr.mxu0 0.0
    %1199 = vmatpush1.msra.mxu0 %v1060
    %1200 = vmatprep.subr.mxu0 0.0
    %1201 = vmatpush1.msra.mxu0 %v1061
    %1202 = vmatprep.subr.mxu0 0.0
    %1203 = vmatpush1.msra.mxu0 %v1062
    %1204 = vmatprep.subr.mxu0 0.0
    %1205 = vmatpush1.msra.mxu0 %v1063
    %1206 = vmatprep.subr.mxu0 0.0
    %1207 = vmatpush1.msra.mxu0 %v1064
    %1208 = vmatprep.subr.mxu0 0.0
    %1209 = vmatpush1.msra.mxu0 %v1065
    %1210 = vmatprep.subr.mxu0 0.0
    %1211 = vmatpush1.msra.mxu0 %v1066
    %1212 = vmatprep.subr.mxu0 0.0
    %1213 = vmatpush1.msra.mxu0 %v1067
    %1214 = vmatprep.subr.mxu0 0.0
    %1215 = vmatpush1.msra.mxu0 %v1068
    %1216 = vmatprep.subr.mxu0 0.0
    %1217 = vmatpush1.msra.mxu0 %v1069
    %1218 = vmatprep.subr.mxu0 0.0
    %1219 = vmatpush1.msra.mxu0 %v1070
    %1220 = vmatprep.subr.mxu0 0.0
    %1221 = vmatpush1.msra.mxu0 %v1071
    %1222 = vmatprep.subr.mxu0 0.0
    %1223 = vmatpush1.msra.mxu0 %v1072
    %1224 = vmatprep.subr.mxu0 0.0
    %1225 = vmatpush1.msra.mxu0 %v1073
    %1226 = vmatprep.subr.mxu0 0.0
    %1227 = vmatpush1.msra.mxu0 0.0
    %1228 = vmatprep.subr.mxu0 0.0
    %1229 = vmatpush1.msra.mxu0 0.0
    %1230 = vmatprep.subr.mxu0 0.0
    %1231 = vmatpush1.msra.mxu0 0.0
    %1232 = vmatprep.subr.mxu0 0.0
    %1233 = vmatpush1.msra.mxu0 0.0
    %1234 = vmatprep.subr.mxu0 0.0
    %1235 = vmatpush1.msra.mxu0 0.0
    %1236 = vmatprep.subr.mxu0 0.0
    %1237 = vmatpush1.msra.mxu0 0.0
    %1238 = vmatprep.subr.mxu0 0.0
    %1239 = vmatpush1.msra.mxu0 0.0
    %1240 = vmatprep.subr.mxu0 0.0
    %1241 = vmatpush1.msra.mxu0 0.0
    %1242 = vmatprep.mubr.f32.mxu0 %v1082
    %1243 = vmatmul.mubr.f32.gmra.mrb[0].mxu0 %v1004
    %v1244 = vpop.f32.mrb[0].mxu0
    %v1245 = vadd.f32 %v1160, %v1244
    %v1246 = vpop.f32.mrb[0].mxu0
    %1247 = vmatprep.mubr.f32.mxu0 %v1085
    %1248 = vmatmul.mubr.f32.gmra.mrb[0].mxu0 %v1008
    %v1249 = vpop.f32.mrb[0].mxu0
    %v1250 = vadd.f32 %v1165, %v1249
    %v1251 = vpop.f32.mrb[0].mxu0
    %1252 = vmatprep.mubr.f32.mxu0 %v1088
    %1253 = vmatmul.mubr.f32.gmra.mrb[0].mxu0 %v1012
    %v1254 = vpop.f32.mrb[0].mxu0
    %v1255 = vadd.f32 %v1170, %v1254
    %v1256 = vpop.f32.mrb[0].mxu0
    %1257 = vmatprep.mubr.f32.mxu0 %v1091
    %1258 = vmatmul.mubr.f32.gmra.mrb[0].mxu0 %v1016
    %v1259 = vpop.f32.mrb[0].mxu0
    %v1260 = vadd.f32 %v1175, %v1259
    %v1261 = vpop.f32.mrb[0].mxu0
    %1262 = vdwg.mxu0
    %v1263 = vxor.u32 %v1245, 2147483648
    %v1264 = vxor.u32 %v1250, 2147483648
    %v1265 = vxor.u32 %v1255, 2147483648
    %v1266 = vxor.u32 %v1260, 2147483648
    %v1267 = vmul.f32 %v1263, 1.442695
    %v1268 = vpow.pop %v1267
    %v1269 = vmul.f32 %v1264, 1.442695
    %v1270 = vpow.pop %v1269
    %v1271 = vmul.f32 %v1265, 1.442695
    %v1272 = vpow.pop %v1271
    %v1273 = vmul.f32 %v1266, 1.442695
    %v1274 = vpow.pop %v1273
    %v1275 = vadd.f32 %v1268, 1.0
    %v1276 = vadd.f32 %v1270, 1.0
    %v1277 = vadd.f32 %v1272, 1.0
    %v1278 = vadd.f32 %v1274, 1.0
    %v1279 = vrcp.pop %v1275
    %v1280 = vmul.f32 1.0, %v1279
    %v1281 = vrcp.pop %v1276
    %v1282 = vmul.f32 1.0, %v1281
    %v1283 = vrcp.pop %v1277
    %v1284 = vmul.f32 1.0, %v1283
    %v1285 = vrcp.pop %v1278
    %v1286 = vmul.f32 1.0, %v1285
    %v1287 = vmul.f32 %v1245, %v1280
    %v1288 = vmul.f32 %v1250, %v1282
    %v1289 = vmul.f32 %v1255, %v1284
    %v1290 = vmul.f32 %v1260, %v1286
    %1291 = vst [vmem:[#allocation5] sm:$0xff] 0.0
    %1292 = vst [vmem:[#allocation5 + $0x8] sm:$0xff] 0.0
    %1293 = vst [vmem:[#allocation5 + $0x10] sm:$0xff] 0.0
    %1294 = vst.msk [vmem:[#allocation5 + $0x18] sm:$0xff] %vm861, 0.0
    %1295 = vst [vmem:[#allocation5 + $0x20] sm:$0xff] 0.0
    %1296 = vst [vmem:[#allocation5 + $0x28] sm:$0xff] 0.0
    %1297 = vst [vmem:[#allocation5 + $0x30] sm:$0xff] 0.0
    %1298 = vst.msk [vmem:[#allocation5 + $0x38] sm:$0xff] %vm861, 0.0
    %1299 = vst [vmem:[#allocation5 + $0x40] sm:$0xff] 0.0
    %1300 = vst [vmem:[#allocation5 + $0x48] sm:$0xff] 0.0
    %1301 = vst [vmem:[#allocation5 + $0x50] sm:$0xff] 0.0
    %1302 = vst.msk [vmem:[#allocation5 + $0x58] sm:$0xff] %vm861, 0.0
    %1303 = vst [vmem:[#allocation5 + $0x60] sm:$0xff] 0.0
    %1304 = vst [vmem:[#allocation5 + $0x68] sm:$0xff] 0.0
    %1305 = vst [vmem:[#allocation5 + $0x70] sm:$0xff] 0.0
    %1306 = vst.msk [vmem:[#allocation5 + $0x78] sm:$0xff] %vm861, 0.0
    %v1309 = vrot.slane %v1287, 5
    %v1310 = vrot.slane %v1288, 5
    %v1311 = vsel %vm228, %v1309, %v1310
    %1314 = vst.msk [vmem:[#allocation5] sm:$0xf8] %vm882, %v1309
    %1315 = vst.msk [vmem:[#allocation5 + $0x20] sm:$0xff] %vm861, %v1311
    %v1318 = vrot.slane %v1289, 5
    %v1319 = vrot.slane %v1290, 5
    %v1320 = vsel %vm228, %v1318, %v1319
    %1323 = vst.msk [vmem:[#allocation5 + $0x40] sm:$0xf8] %vm882, %v1318
    %1324 = vst.msk [vmem:[#allocation5 + $0x60] sm:$0xff] %vm861, %v1320
    %v1325 = vrot.slane %v1287, 6
    %v1326 = vrot.slane %v1288, 6
    %v1327 = vsel %vm247, %v1325, %v1326
    %1328 = vrot.lane.b32.xlu0 %v1325, 64
    %v1329 = vpop.permute.xlu0 %1328
    %1330 = vrot.lane.b32.xlu0 %v1327, 64
    %v1331 = vpop.permute.xlu0 %1330
    %1334 = vst.msk [vmem:[#allocation5] sm:$0xfc] %vm903, %v1329
    %1335 = vst.msk [vmem:[#allocation5 + $0x20] sm:$0xff] %vm905, %v1331
    %v1336 = vrot.slane %v1289, 6
    %v1337 = vrot.slane %v1290, 6
    %v1338 = vsel %vm247, %v1336, %v1337
    %1339 = vrot.lane.b32.xlu0 %v1336, 64
    %v1340 = vpop.permute.xlu0 %1339
    %1341 = vrot.lane.b32.xlu0 %v1338, 64
    %v1342 = vpop.permute.xlu0 %1341
    %1345 = vst.msk [vmem:[#allocation5 + $0x40] sm:$0xfc] %vm903, %v1340
    %1346 = vst.msk [vmem:[#allocation5 + $0x60] sm:$0xff] %vm905, %v1342
    %v1347 = vrot.slane %v1287, 7
    %v1348 = vrot.slane %v1288, 7
    %v1349 = vsel %vm272, %v1347, %v1348
    %1352 = vst.msk [vmem:[#allocation5 + $0x8] sm:$0xfe] %vm923, %v1347
    %1353 = vst.msk [vmem:[#allocation5 + $0x28] sm:$0xff] %vm861, %v1349
    %v1354 = vrot.slane %v1289, 7
    %v1355 = vrot.slane %v1290, 7
    %v1356 = vsel %vm272, %v1354, %v1355
    %1359 = vst.msk [vmem:[#allocation5 + $0x48] sm:$0xfe] %vm923, %v1354
    %1360 = vst.msk [vmem:[#allocation5 + $0x68] sm:$0xff] %vm861, %v1356
    %1361 = vrot.lane.b32.xlu0 %v1287, 64
    %v1362 = vpop.permute.xlu0 %1361
    %1363 = vrot.lane.b32.xlu0 %v1288, 64
    %v1364 = vpop.permute.xlu0 %1363
    %1367 = vst.msk [vmem:[#allocation5 + $0x8] sm:$0xff] %vm905, %v1362
    %1368 = vst.msk [vmem:[#allocation5 + $0x28] sm:$0xff] %vm905, %v1364
    %1369 = vrot.lane.b32.xlu0 %v1289, 64
    %v1370 = vpop.permute.xlu0 %1369
    %1371 = vrot.lane.b32.xlu0 %v1290, 64
    %v1372 = vpop.permute.xlu0 %1371
    %1375 = vst.msk [vmem:[#allocation5 + $0x48] sm:$0xff] %vm905, %v1370
    %1376 = vst.msk [vmem:[#allocation5 + $0x68] sm:$0xff] %vm905, %v1372
    %v1377 = vrot.slane %v1287, 1
    %v1378 = vrot.slane %v1288, 1
    %v1379 = vsel %vm314, %v1377, %v1378
    %1382 = vst.msk [vmem:[#allocation5 + $0x10] sm:$0xff] %vm861, %v1379
    %1383 = vst.msk [vmem:[#allocation5 + $0x30] sm:$0x7f] %vm955, %v1378
    %v1384 = vrot.slane %v1289, 1
    %v1385 = vrot.slane %v1290, 1
    %v1386 = vsel %vm314, %v1384, %v1385
    %1389 = vst.msk [vmem:[#allocation5 + $0x50] sm:$0xff] %vm861, %v1386
    %1390 = vst.msk [vmem:[#allocation5 + $0x70] sm:$0x7f] %vm955, %v1385
    %v1391 = vrot.slane %v1287, 2
    %v1392 = vrot.slane %v1288, 2
    %v1393 = vsel %vm330, %v1391, %v1392
    %1394 = vrot.lane.b32.xlu0 %v1393, 64
    %v1395 = vpop.permute.xlu0 %1394
    %1396 = vrot.lane.b32.xlu0 %v1392, 64
    %v1397 = vpop.permute.xlu0 %1396
    %1400 = vst.msk [vmem:[#allocation5 + $0x10] sm:$0xff] %vm905, %v1395
    %1401 = vst.msk [vmem:[#allocation5 + $0x30] sm:$0x3f] %vm974, %v1397
    %v1402 = vrot.slane %v1289, 2
    %v1403 = vrot.slane %v1290, 2
    %v1404 = vsel %vm330, %v1402, %v1403
    %1405 = vrot.lane.b32.xlu0 %v1404, 64
    %v1406 = vpop.permute.xlu0 %1405
    %1407 = vrot.lane.b32.xlu0 %v1403, 64
    %v1408 = vpop.permute.xlu0 %1407
    %1411 = vst.msk [vmem:[#allocation5 + $0x50] sm:$0xff] %vm905, %v1406
    %1412 = vst.msk [vmem:[#allocation5 + $0x70] sm:$0x3f] %vm974, %v1408
    %v1413 = vrot.slane %v1287, 3
    %v1414 = vrot.slane %v1288, 3
    %v1415 = vsel %vm354, %v1413, %v1414
    %1418 = vst.msk [vmem:[#allocation5 + $0x18] sm:$0xff] %vm861, %v1415
    %1419 = vst.msk [vmem:[#allocation5 + $0x38] sm:$0x1f] %vm993, %v1414
    %v1420 = vrot.slane %v1289, 3
    %v1421 = vrot.slane %v1290, 3
    %v1422 = vsel %vm354, %v1420, %v1421
    %1425 = vst.msk [vmem:[#allocation5 + $0x58] sm:$0xff] %vm861, %v1422
    %1426 = vst.msk [vmem:[#allocation5 + $0x78] sm:$0x1f] %vm993, %v1421
    %v1427 = vld [vmem:[#allocation5] sm:$0xff]
    %v1428 = vld [vmem:[#allocation5 + $0x8] sm:$0xff]
    %v1429 = vld [vmem:[#allocation5 + $0x10] sm:$0xff]
    %v1430 = vld [vmem:[#allocation5 + $0x18] sm:$0xff]
    %v1431 = vld [vmem:[#allocation5 + $0x20] sm:$0xff]
    %v1432 = vld [vmem:[#allocation5 + $0x28] sm:$0xff]
    %v1433 = vld [vmem:[#allocation5 + $0x30] sm:$0xff]
    %v1434 = vld [vmem:[#allocation5 + $0x38] sm:$0xff]
    %v1435 = vld [vmem:[#allocation5 + $0x40] sm:$0xff]
    %v1436 = vld [vmem:[#allocation5 + $0x48] sm:$0xff]
    %v1437 = vld [vmem:[#allocation5 + $0x50] sm:$0xff]
    %v1438 = vld [vmem:[#allocation5 + $0x58] sm:$0xff]
    %v1439 = vld [vmem:[#allocation5 + $0x60] sm:$0xff]
    %v1440 = vld [vmem:[#allocation5 + $0x68] sm:$0xff]
    %v1441 = vld [vmem:[#allocation5 + $0x70] sm:$0xff]
    %v1442 = vld [vmem:[#allocation5 + $0x78] sm:$0xff]
    %v1443 = vld [vmem:[%s11] sm:$0xff]
    %v1444 = vld [vmem:[%s11 + $0x8] sm:$0xff]
    %v1445 = vld [vmem:[%s11 + $0x10] sm:$0xff]
    %v1446 = vld [vmem:[%s11 + $0x18] sm:$0xff]
    %v1447 = vld [vmem:[%s11 + $0x20] sm:$0xff]
    %v1448 = vld [vmem:[%s11 + $0x28] sm:$0xff]
    %v1449 = vld [vmem:[%s11 + $0x30] sm:$0xff]
    %v1450 = vld [vmem:[%s11 + $0x38] sm:$0xff]
    %v1451 = vld [vmem:[%s11 + $0x40] sm:$0xff]
    %v1452 = vld [vmem:[%s11 + $0x48] sm:$0xff]
    %v1453 = vld [vmem:[%s11 + $0x50] sm:$0xff]
    %v1454 = vld [vmem:[%s11 + $0x58] sm:$0xff]
    %v1455 = vld [vmem:[%s11 + $0x60] sm:$0xff]
    %v1456 = vld [vmem:[%s11 + $0x68] sm:$0xff]
    %v1457 = vld [vmem:[%s11 + $0x70] sm:$0xff]
    %v1458 = vld [vmem:[%s11 + $0x78] sm:$0xff]
    %v1459 = vld [vmem:[%s11 + $0x80] sm:$0xff]
    %v1460 = vld [vmem:[%s11 + $0x88] sm:$0xff]
    %v1461 = vld [vmem:[%s11 + $0x90] sm:$0xff]
    %v1462 = vld [vmem:[%s11 + $0x98] sm:$0xff]
    %v1463 = vld [vmem:[%s11 + $0xa0] sm:$0xff]
    %v1464 = vld [vmem:[%s11 + $0xa8] sm:$0xff]
    %v1465 = vld [vmem:[%s11 + $0xb0] sm:$0xff]
    %v1466 = vld [vmem:[%s11 + $0xb8] sm:$0xff]
    %v1467 = vld [vmem:[%s11 + $0xc0] sm:$0xff]
    %v1468 = vld [vmem:[%s11 + $0xc8] sm:$0xff]
    %v1469 = vld [vmem:[%s11 + $0xd0] sm:$0xff]
    %v1470 = vld [vmem:[%s11 + $0xd8] sm:$0xff]
    %v1471 = vld [vmem:[%s11 + $0xe0] sm:$0xff]
    %v1472 = vld [vmem:[%s11 + $0xe8] sm:$0xff]
    %v1473 = vld [vmem:[%s11 + $0xf0] sm:$0xff]
    %v1474 = vld [vmem:[%s11 + $0xf8] sm:$0xff]
    %v1475 = vld [vmem:[%s11 + $0x100] sm:$0xff]
    %v1476 = vld [vmem:[%s11 + $0x108] sm:$0xff]
    %v1477 = vld [vmem:[%s11 + $0x110] sm:$0xff]
    %v1478 = vld [vmem:[%s11 + $0x118] sm:$0xff]
    %v1479 = vld [vmem:[%s11 + $0x120] sm:$0xff]
    %v1480 = vld [vmem:[%s11 + $0x128] sm:$0xff]
    %v1481 = vld [vmem:[%s11 + $0x130] sm:$0xff]
    %v1482 = vld [vmem:[%s11 + $0x138] sm:$0xff]
    %v1483 = vld [vmem:[%s11 + $0x140] sm:$0xff]
    %v1484 = vld [vmem:[%s11 + $0x148] sm:$0xff]
    %v1485 = vld [vmem:[%s11 + $0x150] sm:$0xff]
    %v1486 = vld [vmem:[%s11 + $0x158] sm:$0xff]
    %v1487 = vld [vmem:[%s11 + $0x160] sm:$0xff]
    %v1488 = vld [vmem:[%s11 + $0x168] sm:$0xff]
    %v1489 = vld [vmem:[%s11 + $0x170] sm:$0xff]
    %v1490 = vld [vmem:[%s11 + $0x178] sm:$0xff]
    %v1491 = vld [vmem:[%s11 + $0x180] sm:$0xff]
    %v1492 = vld [vmem:[%s11 + $0x188] sm:$0xff]
    %v1493 = vld [vmem:[%s11 + $0x190] sm:$0xff]
    %v1494 = vld [vmem:[%s11 + $0x198] sm:$0xff]
    %v1495 = vld [vmem:[%s11 + $0x1a0] sm:$0xff]
    %v1496 = vld [vmem:[%s11 + $0x1a8] sm:$0xff]
    %v1497 = vld [vmem:[%s11 + $0x1b0] sm:$0xff]
    %v1498 = vld [vmem:[%s11 + $0x1b8] sm:$0xff]
    %v1499 = vld [vmem:[%s12] sm:$0x1]
    %v1501 = vlaneseq
    %v1502 = vshrl.u32 %v1501, 7
    %v1503 = vsub.s32 0, %v1502
    %v1504 = vrot.slane %v1499, %v1503
    %v1507 = vsel %vm861, %v1430, 0
    %v1510 = vsel %vm861, %v1434, 0
    %v1513 = vsel %vm861, %v1438, 0
    %v1516 = vsel %vm861, %v1442, 0
    %1518 = vmatprep.subr.mxu0 0.0
    %1519 = vmatpush1.msra.mxu0 %v1443
    %1520 = vmatprep.subr.mxu0 0.0
    %1521 = vmatpush1.msra.mxu0 %v1444
    %1522 = vmatprep.subr.mxu0 0.0
    %1523 = vmatpush1.msra.mxu0 %v1445
    %1524 = vmatprep.subr.mxu0 0.0
    %1525 = vmatpush1.msra.mxu0 %v1446
    %1526 = vmatprep.subr.mxu0 0.0
    %1527 = vmatpush1.msra.mxu0 %v1447
    %1528 = vmatprep.subr.mxu0 0.0
    %1529 = vmatpush1.msra.mxu0 %v1448
    %1530 = vmatprep.subr.mxu0 0.0
    %1531 = vmatpush1.msra.mxu0 %v1449
    %1532 = vmatprep.subr.mxu0 0.0
    %1533 = vmatpush1.msra.mxu0 %v1450
    %1534 = vmatprep.subr.mxu0 0.0
    %1535 = vmatpush1.msra.mxu0 %v1451
    %1536 = vmatprep.subr.mxu0 0.0
    %1537 = vmatpush1.msra.mxu0 %v1452
    %1538 = vmatprep.subr.mxu0 0.0
    %1539 = vmatpush1.msra.mxu0 %v1453
    %1540 = vmatprep.subr.mxu0 0.0
    %1541 = vmatpush1.msra.mxu0 %v1454
    %1542 = vmatprep.subr.mxu0 0.0
    %1543 = vmatpush1.msra.mxu0 %v1455
    %1544 = vmatprep.subr.mxu0 0.0
    %1545 = vmatpush1.msra.mxu0 %v1456
    %1546 = vmatprep.subr.mxu0 0.0
    %1547 = vmatpush1.msra.mxu0 %v1457
    %1548 = vmatprep.subr.mxu0 0.0
    %1549 = vmatpush1.msra.mxu0 %v1458
    %1550 = vmatprep.subr.mxu0 0.0
    %1551 = vmatpush1.msra.mxu0 %v1459
    %1552 = vmatprep.subr.mxu0 0.0
    %1553 = vmatpush1.msra.mxu0 %v1460
    %1554 = vmatprep.subr.mxu0 0.0
    %1555 = vmatpush1.msra.mxu0 %v1461
    %1556 = vmatprep.subr.mxu0 0.0
    %1557 = vmatpush1.msra.mxu0 %v1462
    %1558 = vmatprep.subr.mxu0 0.0
    %1559 = vmatpush1.msra.mxu0 %v1463
    %1560 = vmatprep.subr.mxu0 0.0
    %1561 = vmatpush1.msra.mxu0 %v1464
    %1562 = vmatprep.subr.mxu0 0.0
    %1563 = vmatpush1.msra.mxu0 %v1465
    %1564 = vmatprep.subr.mxu0 0.0
    %1565 = vmatpush1.msra.mxu0 %v1466
    %1566 = vmatprep.subr.mxu0 0.0
    %1567 = vmatpush1.msra.mxu0 %v1467
    %1568 = vmatprep.subr.mxu0 0.0
    %1569 = vmatpush1.msra.mxu0 %v1468
    %1570 = vmatprep.subr.mxu0 0.0
    %1571 = vmatpush1.msra.mxu0 %v1469
    %1572 = vmatprep.subr.mxu0 0.0
    %1573 = vmatpush1.msra.mxu0 %v1470
    %1574 = vmatprep.subr.mxu0 0.0
    %1575 = vmatpush1.msra.mxu0 %v1471
    %1576 = vmatprep.subr.mxu0 0.0
    %1577 = vmatpush1.msra.mxu0 %v1472
    %1578 = vmatprep.subr.mxu0 0.0
    %1579 = vmatpush1.msra.mxu0 %v1473
    %1580 = vmatprep.subr.mxu0 0.0
    %1581 = vmatpush1.msra.mxu0 %v1474
    %1582 = vmatprep.mubr.f32.mxu0 %v1428
    %1583 = vmatmul.mubr.f32.gmra.mrb[0].mxu0 %v1427
    %v1584 = vpop.f32.mrb[0].mxu0
    %v1585 = vadd.f32 %v1504, %v1584
    %v1586 = vpop.f32.mrb[0].mxu0
    %1587 = vmatprep.mubr.f32.mxu0 %v1432
    %1588 = vmatmul.mubr.f32.gmra.mrb[0].mxu0 %v1431
    %v1589 = vpop.f32.mrb[0].mxu0
    %v1590 = vadd.f32 %v1504, %v1589
    %v1591 = vpop.f32.mrb[0].mxu0
    %1592 = vmatprep.mubr.f32.mxu0 %v1436
    %1593 = vmatmul.mubr.f32.gmra.mrb[0].mxu0 %v1435
    %v1594 = vpop.f32.mrb[0].mxu0
    %v1595 = vadd.f32 %v1504, %v1594
    %v1596 = vpop.f32.mrb[0].mxu0
    %1597 = vmatprep.mubr.f32.mxu0 %v1440
    %1598 = vmatmul.mubr.f32.gmra.mrb[0].mxu0 %v1439
    %v1599 = vpop.f32.mrb[0].mxu0
    %v1600 = vadd.f32 %v1504, %v1599
    %v1601 = vpop.f32.mrb[0].mxu0
    %1602 = vdwg.mxu0
    %1603 = vmatprep.subr.mxu0 0.0
    %1604 = vmatpush1.msra.mxu0 %v1475
    %1605 = vmatprep.subr.mxu0 0.0
    %1606 = vmatpush1.msra.mxu0 %v1476
    %1607 = vmatprep.subr.mxu0 0.0
    %1608 = vmatpush1.msra.mxu0 %v1477
    %1609 = vmatprep.subr.mxu0 0.0
    %1610 = vmatpush1.msra.mxu0 %v1478
    %1611 = vmatprep.subr.mxu0 0.0
    %1612 = vmatpush1.msra.mxu0 %v1479
    %1613 = vmatprep.subr.mxu0 0.0
    %1614 = vmatpush1.msra.mxu0 %v1480
    %1615 = vmatprep.subr.mxu0 0.0
    %1616 = vmatpush1.msra.mxu0 %v1481
    %1617 = vmatprep.subr.mxu0 0.0
    %1618 = vmatpush1.msra.mxu0 %v1482
    %1619 = vmatprep.subr.mxu0 0.0
    %1620 = vmatpush1.msra.mxu0 %v1483
    %1621 = vmatprep.subr.mxu0 0.0
    %1622 = vmatpush1.msra.mxu0 %v1484
    %1623 = vmatprep.subr.mxu0 0.0
    %1624 = vmatpush1.msra.mxu0 %v1485
    %1625 = vmatprep.subr.mxu0 0.0
    %1626 = vmatpush1.msra.mxu0 %v1486
    %1627 = vmatprep.subr.mxu0 0.0
    %1628 = vmatpush1.msra.mxu0 %v1487
    %1629 = vmatprep.subr.mxu0 0.0
    %1630 = vmatpush1.msra.mxu0 %v1488
    %1631 = vmatprep.subr.mxu0 0.0
    %1632 = vmatpush1.msra.mxu0 %v1489
    %1633 = vmatprep.subr.mxu0 0.0
    %1634 = vmatpush1.msra.mxu0 %v1490
    %1635 = vmatprep.subr.mxu0 0.0
    %1636 = vmatpush1.msra.mxu0 %v1491
    %1637 = vmatprep.subr.mxu0 0.0
    %1638 = vmatpush1.msra.mxu0 %v1492
    %1639 = vmatprep.subr.mxu0 0.0
    %1640 = vmatpush1.msra.mxu0 %v1493
    %1641 = vmatprep.subr.mxu0 0.0
    %1642 = vmatpush1.msra.mxu0 %v1494
    %1643 = vmatprep.subr.mxu0 0.0
    %1644 = vmatpush1.msra.mxu0 %v1495
    %1645 = vmatprep.subr.mxu0 0.0
    %1646 = vmatpush1.msra.mxu0 %v1496
    %1647 = vmatprep.subr.mxu0 0.0
    %1648 = vmatpush1.msra.mxu0 %v1497
    %1649 = vmatprep.subr.mxu0 0.0
    %1650 = vmatpush1.msra.mxu0 %v1498
    %1651 = vmatprep.subr.mxu0 0.0
    %1652 = vmatpush1.msra.mxu0 0.0
    %1653 = vmatprep.subr.mxu0 0.0
    %1654 = vmatpush1.msra.mxu0 0.0
    %1655 = vmatprep.subr.mxu0 0.0
    %1656 = vmatpush1.msra.mxu0 0.0
    %1657 = vmatprep.subr.mxu0 0.0
    %1658 = vmatpush1.msra.mxu0 0.0
    %1659 = vmatprep.subr.mxu0 0.0
    %1660 = vmatpush1.msra.mxu0 0.0
    %1661 = vmatprep.subr.mxu0 0.0
    %1662 = vmatpush1.msra.mxu0 0.0
    %1663 = vmatprep.subr.mxu0 0.0
    %1664 = vmatpush1.msra.mxu0 0.0
    %1665 = vmatprep.subr.mxu0 0.0
    %1666 = vmatpush1.msra.mxu0 0.0
    %1667 = vmatprep.mubr.f32.mxu0 %v1507
    %1668 = vmatmul.mubr.f32.gmra.mrb[0].mxu0 %v1429
    %v1669 = vpop.f32.mrb[0].mxu0
    %v1670 = vadd.f32 %v1585, %v1669
    %v1671 = vpop.f32.mrb[0].mxu0
    %1672 = vmatprep.mubr.f32.mxu0 %v1510
    %1673 = vmatmul.mubr.f32.gmra.mrb[0].mxu0 %v1433
    %v1674 = vpop.f32.mrb[0].mxu0
    %v1675 = vadd.f32 %v1590, %v1674
    %v1676 = vpop.f32.mrb[0].mxu0
    %1677 = vmatprep.mubr.f32.mxu0 %v1513
    %1678 = vmatmul.mubr.f32.gmra.mrb[0].mxu0 %v1437
    %v1679 = vpop.f32.mrb[0].mxu0
    %v1680 = vadd.f32 %v1595, %v1679
    %v1681 = vpop.f32.mrb[0].mxu0
    %1682 = vmatprep.mubr.f32.mxu0 %v1516
    %1683 = vmatmul.mubr.f32.gmra.mrb[0].mxu0 %v1441
    %v1684 = vpop.f32.mrb[0].mxu0
    %v1685 = vadd.f32 %v1600, %v1684
    %v1686 = vpop.f32.mrb[0].mxu0
    %1687 = vdwg.mxu0
    %v1688 = vxor.u32 %v1670, 2147483648
    %v1689 = vxor.u32 %v1675, 2147483648
    %v1690 = vxor.u32 %v1680, 2147483648
    %v1691 = vxor.u32 %v1685, 2147483648
    %v1692 = vmul.f32 %v1688, 1.442695
    %v1693 = vpow.pop %v1692
    %v1694 = vmul.f32 %v1689, 1.442695
    %v1695 = vpow.pop %v1694
    %v1696 = vmul.f32 %v1690, 1.442695
    %v1697 = vpow.pop %v1696
    %v1698 = vmul.f32 %v1691, 1.442695
    %v1699 = vpow.pop %v1698
    %v1700 = vadd.f32 %v1693, 1.0
    %v1701 = vadd.f32 %v1695, 1.0
    %v1702 = vadd.f32 %v1697, 1.0
    %v1703 = vadd.f32 %v1699, 1.0
    %v1704 = vrcp.pop %v1700
    %v1705 = vmul.f32 1.0, %v1704
    %v1706 = vrcp.pop %v1701
    %v1707 = vmul.f32 1.0, %v1706
    %v1708 = vrcp.pop %v1702
    %v1709 = vmul.f32 1.0, %v1708
    %v1710 = vrcp.pop %v1703
    %v1711 = vmul.f32 1.0, %v1710
    %v1712 = vmul.f32 %v1670, %v1705
    %v1713 = vmul.f32 %v1675, %v1707
    %v1714 = vmul.f32 %v1680, %v1709
    %v1715 = vmul.f32 %v1685, %v1711
    %v1716 = vld [vmem:[%s2] sm:$0x3]
    %v1718 = vsel %vm236, %v1716, 0
    %1720 = vmatprep.subr.mxu0 0.0
    %1721 = vmatpush1.msra.mxu0 %v1712
    %1722 = vmatprep.subr.mxu0 0.0
    %1723 = vmatpush1.msra.mxu0 %v1713
    %1724 = vmatprep.subr.mxu0 0.0
    %1725 = vmatpush1.msra.mxu0 %v1714
    %1726 = vmatprep.subr.mxu0 0.0
    %1727 = vmatpush1.msra.mxu0 %v1715
    %1728 = vmatprep.subr.mxu0 0.0
    %1729 = vmatpush1.msra.mxu0 0.0
    %1730 = vmatprep.subr.mxu0 0.0
    %1731 = vmatpush1.msra.mxu0 0.0
    %1732 = vmatprep.subr.mxu0 0.0
    %1733 = vmatpush1.msra.mxu0 0.0
    %1734 = vmatprep.subr.mxu0 0.0
    %1735 = vmatpush1.msra.mxu0 0.0
    %1736 = vmatprep.subr.mxu0 0.0
    %1737 = vmatpush1.msra.mxu0 0.0
    %1738 = vmatprep.subr.mxu0 0.0
    %1739 = vmatpush1.msra.mxu0 0.0
    %1740 = vmatprep.subr.mxu0 0.0
    %1741 = vmatpush1.msra.mxu0 0.0
    %1742 = vmatprep.subr.mxu0 0.0
    %1743 = vmatpush1.msra.mxu0 0.0
    %1744 = vmatprep.subr.mxu0 0.0
    %1745 = vmatpush1.msra.mxu0 0.0
    %1746 = vmatprep.subr.mxu0 0.0
    %1747 = vmatpush1.msra.mxu0 0.0
    %1748 = vmatprep.subr.mxu0 0.0
    %1749 = vmatpush1.msra.mxu0 0.0
    %1750 = vmatprep.subr.mxu0 0.0
    %1751 = vmatpush1.msra.mxu0 0.0
    %1752 = vmatprep.subr.mxu0 0.0
    %1753 = vmatpush1.msra.mxu0 0.0
    %1754 = vmatprep.subr.mxu0 0.0
    %1755 = vmatpush1.msra.mxu0 0.0
    %1756 = vmatprep.subr.mxu0 0.0
    %1757 = vmatpush1.msra.mxu0 0.0
    %1758 = vmatprep.subr.mxu0 0.0
    %1759 = vmatpush1.msra.mxu0 0.0
    %1760 = vmatprep.subr.mxu0 0.0
    %1761 = vmatpush1.msra.mxu0 0.0
    %1762 = vmatprep.subr.mxu0 0.0
    %1763 = vmatpush1.msra.mxu0 0.0
    %1764 = vmatprep.subr.mxu0 0.0
    %1765 = vmatpush1.msra.mxu0 0.0
    %1766 = vmatprep.subr.mxu0 0.0
    %1767 = vmatpush1.msra.mxu0 0.0
    %1768 = vmatprep.subr.mxu0 0.0
    %1769 = vmatpush1.msra.mxu0 0.0
    %1770 = vmatprep.subr.mxu0 0.0
    %1771 = vmatpush1.msra.mxu0 0.0
    %1772 = vmatprep.subr.mxu0 0.0
    %1773 = vmatpush1.msra.mxu0 0.0
    %1774 = vmatprep.subr.mxu0 0.0
    %1775 = vmatpush1.msra.mxu0 0.0
    %1776 = vmatprep.subr.mxu0 0.0
    %1777 = vmatpush1.msra.mxu0 0.0
    %1778 = vmatprep.subr.mxu0 0.0
    %1779 = vmatpush1.msra.mxu0 0.0
    %1780 = vmatprep.subr.mxu0 0.0
    %1781 = vmatpush1.msra.mxu0 0.0
    %1782 = vmatprep.subr.mxu0 0.0
    %1783 = vmatpush1.msra.mxu0 0.0
    %1784 = vmatprep.mubr.f32.mxu0 0.0
    %1785 = vmatmul.mubr.f32.gmra.mrb[0].mxu0 %v1718
    %v1786 = vpop.f32.mrb[0].mxu0
    %v1787 = vadd.f32 0.0, %v1786
    %v1788 = vpop.f32.mrb[0].mxu0
    %1789 = vdwg.mxu0
    %v1790 = vld [vmem:[%s13] sm:$0xff]
    %v1791 = vld [vmem:[%s13 + $0x8] sm:$0xff]
    %v1792 = vld [vmem:[%s13 + $0x10] sm:$0xff]
    %v1793 = vld [vmem:[%s13 + $0x18] sm:$0xff]
    %v1794 = vld [vmem:[%s13 + $0x20] sm:$0xff]
    %v1795 = vld [vmem:[%s13 + $0x28] sm:$0xff]
    %v1796 = vld [vmem:[%s13 + $0x30] sm:$0xff]
    %v1797 = vld [vmem:[%s13 + $0x38] sm:$0xff]
    %v1798 = vld [vmem:[%s14] sm:$0x1]
    %v1800 = vlaneseq
    %v1801 = vshrl.u32 %v1800, 7
    %v1802 = vsub.s32 0, %v1801
    %v1803 = vrot.slane %v1798, %v1802
    %v1806 = vsel %vm861, %v1787, 0
    %1808 = vmatprep.subr.mxu0 0.0
    %1809 = vmatpush1.msra.mxu0 %v1790
    %1810 = vmatprep.subr.mxu0 0.0
    %1811 = vmatpush1.msra.mxu0 %v1791
    %1812 = vmatprep.subr.mxu0 0.0
    %1813 = vmatpush1.msra.mxu0 %v1792
    %1814 = vmatprep.subr.mxu0 0.0
    %1815 = vmatpush1.msra.mxu0 %v1793
    %1816 = vmatprep.subr.mxu0 0.0
    %1817 = vmatpush1.msra.mxu0 %v1794
    %1818 = vmatprep.subr.mxu0 0.0
    %1819 = vmatpush1.msra.mxu0 %v1795
    %1820 = vmatprep.subr.mxu0 0.0
    %1821 = vmatpush1.msra.mxu0 %v1796
    %1822 = vmatprep.subr.mxu0 0.0
    %1823 = vmatpush1.msra.mxu0 %v1797
    %1824 = vmatprep.subr.mxu0 0.0
    %1825 = vmatpush1.msra.mxu0 0.0
    %1826 = vmatprep.subr.mxu0 0.0
    %1827 = vmatpush1.msra.mxu0 0.0
    %1828 = vmatprep.subr.mxu0 0.0
    %1829 = vmatpush1.msra.mxu0 0.0
    %1830 = vmatprep.subr.mxu0 0.0
    %1831 = vmatpush1.msra.mxu0 0.0
    %1832 = vmatprep.subr.mxu0 0.0
    %1833 = vmatpush1.msra.mxu0 0.0
    %1834 = vmatprep.subr.mxu0 0.0
    %1835 = vmatpush1.msra.mxu0 0.0
    %1836 = vmatprep.subr.mxu0 0.0
    %1837 = vmatpush1.msra.mxu0 0.0
    %1838 = vmatprep.subr.mxu0 0.0
    %1839 = vmatpush1.msra.mxu0 0.0
    %1840 = vmatprep.subr.mxu0 0.0
    %1841 = vmatpush1.msra.mxu0 0.0
    %1842 = vmatprep.subr.mxu0 0.0
    %1843 = vmatpush1.msra.mxu0 0.0
    %1844 = vmatprep.subr.mxu0 0.0
    %1845 = vmatpush1.msra.mxu0 0.0
    %1846 = vmatprep.subr.mxu0 0.0
    %1847 = vmatpush1.msra.mxu0 0.0
    %1848 = vmatprep.subr.mxu0 0.0
    %1849 = vmatpush1.msra.mxu0 0.0
    %1850 = vmatprep.subr.mxu0 0.0
    %1851 = vmatpush1.msra.mxu0 0.0
    %1852 = vmatprep.subr.mxu0 0.0
    %1853 = vmatpush1.msra.mxu0 0.0
    %1854 = vmatprep.subr.mxu0 0.0
    %1855 = vmatpush1.msra.mxu0 0.0
    %1856 = vmatprep.subr.mxu0 0.0
    %1857 = vmatpush1.msra.mxu0 0.0
    %1858 = vmatprep.subr.mxu0 0.0
    %1859 = vmatpush1.msra.mxu0 0.0
    %1860 = vmatprep.subr.mxu0 0.0
    %1861 = vmatpush1.msra.mxu0 0.0
    %1862 = vmatprep.subr.mxu0 0.0
    %1863 = vmatpush1.msra.mxu0 0.0
    %1864 = vmatprep.subr.mxu0 0.0
    %1865 = vmatpush1.msra.mxu0 0.0
    %1866 = vmatprep.subr.mxu0 0.0
    %1867 = vmatpush1.msra.mxu0 0.0
    %1868 = vmatprep.subr.mxu0 0.0
    %1869 = vmatpush1.msra.mxu0 0.0
    %1870 = vmatprep.subr.mxu0 0.0
    %1871 = vmatpush1.msra.mxu0 0.0
    %1872 = vmatprep.mubr.f32.mxu0 0.0
    %1873 = vmatmul.mubr.f32.gmra.mrb[0].mxu0 %v1806
    %v1874 = vpop.f32.mrb[0].mxu0
    %v1875 = vadd.f32 %v1803, %v1874
    %v1876 = vpop.f32.mrb[0].mxu0
    %1877 = vdwg.mxu0
    %v1878 = vxor.u32 %v1875, 2147483648
    %v1879 = vmul.f32 %v1878, 1.442695
    %v1880 = vpow.pop %v1879
    %v1881 = vadd.f32 %v1880, 1.0
    %v1882 = vrcp.pop %v1881
    %v1883 = vmul.f32 1.0, %v1882
    %v1884 = vmul.f32 %v1875, %v1883
    %v1885 = vsel %vm247, %v1884, 0.0
    %1886 = vadd.xlane.f32.xlu0 %v1885
    %v1887 = vpop.xlane.xlu0 %1886
    %v1888 = vrcp.pop 128.0
    %v1889 = vmul.f32 %v1887, %v1888
    %v1890 = vsub.f32 %v1884, %v1889
    %v1891 = vmul.f32 %v1890, %v1890
    %v1892 = vsel %vm247, %v1891, 0.0
    %1893 = vadd.xlane.f32.xlu0 %v1892
    %v1894 = vpop.xlane.xlu0 %1893
    %v1895 = vmul.f32 %v1894, %v1888
    %v1896 = vadd.f32 %v1895, 1e-05
    %v1897 = vrsqrt.pop %v1896
    %v1898 = vmul.f32 %v1890, %v1897
    %v1899 = vld [vmem:[%s15] sm:$0x1]
    %v1901 = vlaneseq
    %v1902 = vshrl.u32 %v1901, 7
    %v1903 = vsub.s32 0, %v1902
    %v1904 = vrot.slane %v1899, %v1903
    %v1906 = vmul.f32 %v1898, %v1904
    %v1907 = vld [vmem:[%s16] sm:$0x1]
    %v1909 = vlaneseq
    %v1910 = vshrl.u32 %v1909, 7
    %v1911 = vsub.s32 0, %v1910
    %v1912 = vrot.slane %v1907, %v1911
    %v1914 = vadd.f32 %v1906, %v1912
    %1915 = vst [vmem:[#allocation6] sm:$0x3] %v1914
    // Predicated region
    $region70: #{tpu_custom_call.1} parent=1 // pred_check
      _
    $region71: #{tpu_custom_call.1} parent=1 // pred_check_branch
      %1917 = sbr.rel (0) target = $region73
    $region72: #{tpu_custom_call.1} parent=1 // pred_region
      %s1919 = ssub.s32 32, 32
      %1920 = vsyncadd [#allocation7], %s1919
      %s1922 = sshll.u32 [#allocation6], 4
      %s1923 = int_to_ptr.vmem [resolvable:$true] %s1922
      %1925 = dma.vmem_to_hbm [thread:$0]  %s1923, 32, %s17, [#allocation7]
    $region73: #{tpu_custom_call.1} parent=1 // pred_fallthru
      _
    // Predicated region
    $region74: #{tpu_custom_call.1} parent=1 // pred_check
      _
    $region75: #{tpu_custom_call.1} parent=1 // pred_check_branch
      %1927 = sbr.rel (0) target = $region77
    $region76: #{tpu_custom_call.1} parent=1 // pred_region
      %1928 = dma.done [#allocation7], 32
    $region77: #{tpu_custom_call.1} parent=1 // pred_fallthru
      _
    %1929 = vsyncpa [#allocation7], 1

</llo_original>
